<compile_context>
chip_gen: v6e
topology: v6e:2x2x1
jax: 0.10.0
libtpu: 0.0.40
codegen_flags: <defaults>
</compile_context>

<pallas_src>
import jax
import jax.numpy as jnp
from jax.experimental import pallas as pl
from jax.experimental.pallas import tpu as pltpu

_BB = 8  # batch rows per grid step (one full sublane tile)


def _lstm_proj_kernel(x_ref, wih_ref, whh_ref, b_ref, wproj_ref, y_ref, hall_ref):
    # x_ref:    (T, BB, D)   full sequence for this batch group (time-major)
    # wih_ref:  (D, 4H)      input->gates  (pre-transposed)
    # whh_ref:  (H, 4H)      hidden->gates (pre-transposed)
    # b_ref:    (1, 4H)      b_ih + b_hh
    # wproj_ref:(H, P)       projection    (pre-transposed)
    # y_ref:    (T, BB, P)   outputs for this batch group
    # hall_ref: (T, BB, H)   VMEM scratch collecting h_t for the bulk projection
    T, BB, D = x_ref.shape
    H = whh_ref.shape[0]

    # ---- prologue: input contribution for ALL timesteps as one dense matmul ----
    gx = (jnp.dot(x_ref[...].reshape(T * BB, D), wih_ref[...],
                  preferred_element_type=jnp.float32)
          + b_ref[...]).reshape(T, BB, 4 * H)

    whh = whh_ref[...]
    h = jnp.zeros((BB, H), jnp.float32)
    c = jnp.zeros((BB, H), jnp.float32)

    # ---- serial recurrence: only h @ W_hh + elementwise gates per step ----
    # T is small & static here, so a fully unrolled Python loop keeps every index
    # static.  # TODO(synk): for long sequences switch to lax.fori_loop with
    # pl.ds indexing and time-chunked x blocks so gx/hall stay bounded in VMEM.
    for t in range(T):
        gates = gx[t] + jnp.dot(h, whh, preferred_element_type=jnp.float32)
        sig = jax.nn.sigmoid(gates)          # full 128-lane vreg
        tnh = jnp.tanh(gates)                # full 128-lane vreg
        # PyTorch gate order: i, f, g, o
        i_g = sig[:, 0 * H:1 * H]
        f_g = sig[:, 1 * H:2 * H]
        g_g = tnh[:, 2 * H:3 * H]
        o_g = sig[:, 3 * H:4 * H]
        c = f_g * c + i_g * g_g
        h = o_g * jnp.tanh(c)
        hall_ref[t] = h

    # ---- epilogue: projection for all timesteps as one matmul, one bulk store ----
    y = jnp.dot(hall_ref[...].reshape(T * BB, H), wproj_ref[...],
                preferred_element_type=jnp.float32)
    y_ref[...] = y.reshape(y_ref.shape).astype(y_ref.dtype)


def lstm_with_projection(x, w_ih, w_hh, b_ih, b_hh, w_proj):
    """x: (B, T, D) float32 (batch_first).  Returns (B, T, P) float32."""
    B, T, D = x.shape
    H = w_ih.shape[0] // 4
    P = w_proj.shape[0]

    Bp = pl.cdiv(B, _BB) * _BB                       # pad batch to full sublane tiles
    x_tm = jnp.transpose(x, (1, 0, 2))               # (T, B, D) time-major
    if Bp != B:
        x_tm = jnp.pad(x_tm, ((0, 0), (0, Bp - B), (0, 0)))

    wih_t = w_ih.T                                   # (D, 4H)
    whh_t = w_hh.T                                   # (H, 4H)
    bias = (b_ih + b_hh).reshape(1, 4 * H)           # (1, 4H)
    wproj_t = w_proj.T                               # (H, P)

    y_tm = pl.pallas_call(
        _lstm_proj_kernel,
        out_shape=jax.ShapeDtypeStruct((T, Bp, P), x.dtype),
        grid_spec=pltpu.PrefetchScalarGridSpec(
            num_scalar_prefetch=0,
            grid=(Bp // _BB,),                       # independent batch groups
            in_specs=[
                pl.BlockSpec((T, _BB, D), lambda b: (0, b, 0)),
                pl.BlockSpec((D, 4 * H), lambda b: (0, 0)),
                pl.BlockSpec((H, 4 * H), lambda b: (0, 0)),
                pl.BlockSpec((1, 4 * H), lambda b: (0, 0)),
                pl.BlockSpec((H, P), lambda b: (0, 0)),
            ],
            out_specs=pl.BlockSpec((T, _BB, P), lambda b: (0, b, 0)),
            scratch_shapes=[pltpu.VMEM((T, _BB, H), jnp.float32)],
        ),
        compiler_params=pltpu.CompilerParams(
            # batch groups are fully independent -> megacore-shardable on v7x;
            # no cross-step carried state remains in scratch.
            dimension_semantics=("parallel",),
        ),
    )(x_tm, wih_t, whh_t, bias, wproj_t)

    return jnp.transpose(y_tm[:, :B, :], (1, 0, 2))  # (B, T, P)


def _reference(x, w_ih, w_hh, b_ih, b_hh, w_proj):
    """Pure-JAX reference matching torch.nn.LSTM(batch_first=True) + Linear(no bias)."""
    B, T, D = x.shape
    H = w_hh.shape[1]

    def step(carry, x_t):
        h, c = carry
        gates = x_t @ w_ih.T + h @ w_hh.T + b_ih + b_hh
        i = jax.nn.sigmoid(gates[:, 0 * H:1 * H])
        f = jax.nn.sigmoid(gates[:, 1 * H:2 * H])
        g = jnp.tanh(gates[:, 2 * H:3 * H])
        o = jax.nn.sigmoid(gates[:, 3 * H:4 * H])
        c = f * c + i * g
        h = o * jnp.tanh(c)
        return (h, c), h

    h0 = jnp.zeros((B, H), jnp.float32)
    c0 = jnp.zeros((B, H), jnp.float32)
    _, hs = jax.lax.scan(step, (h0, c0), jnp.transpose(x, (1, 0, 2)))
    o = jnp.transpose(hs, (1, 0, 2))                 # (B, T, H)
    return o @ w_proj.T


if __name__ == "__main__":
    # Small shapes consistent with the module: batch=2, seq=8,
    # input_size=16, hidden_size=32, proj_size=16.
    B, T, D, H, P = 2, 8, 16, 32, 16

    key = jax.random.PRNGKey(0)
    ks = jax.random.split(key, 6)
    bound = 1.0 / jnp.sqrt(jnp.float32(H))           # PyTorch LSTM init range
    w_ih = jax.random.uniform(ks[0], (4 * H, D), jnp.float32, -bound, bound)
    w_hh = jax.random.uniform(ks[1], (4 * H, H), jnp.float32, -bound, bound)
    b_ih = jax.random.uniform(ks[2], (4 * H,), jnp.float32, -bound, bound)
    b_hh = jax.random.uniform(ks[3], (4 * H,), jnp.float32, -bound, bound)
    w_proj = jax.random.uniform(ks[4], (P, H), jnp.float32, -bound, bound)
    x = jax.random.normal(ks[5], (B, T, D), jnp.float32)

    y = lstm_with_projection(x, w_ih, w_hh, b_ih, b_hh, w_proj)
    y = jax.block_until_ready(y)

    y_ref = _reference(x, w_ih, w_hh, b_ih, b_hh, w_proj)
    assert y.shape == (B, T, P)
    assert jnp.allclose(y, y_ref, atol=1e-5, rtol=1e-5), "mismatch vs reference"

    print("KERNEL_OK")
</pallas_src>

<mosaic_0001>
module attributes {stable_mosaic.version = 11 : i64} {
  func.func @_lstm_proj_kernel(%arg0: i32, %arg1: memref<8x8x16xf32, #tpu.memory_space<vmem>>, %arg2: memref<16x128xf32, #tpu.memory_space<vmem>>, %arg3: memref<32x128xf32, #tpu.memory_space<vmem>>, %arg4: memref<1x128xf32, #tpu.memory_space<vmem>>, %arg5: memref<32x16xf32, #tpu.memory_space<vmem>>, %arg6: memref<8x8x16xf32, #tpu.memory_space<vmem>>, %arg7: memref<8x8x32xf32, #tpu.memory_space<vmem>>) attributes {dimension_semantics = [#tpu.dimension_semantics<parallel>], iteration_bounds = array<i64: 1>, scalar_prefetch = 0 : i64, scratch_operands = 1 : i64, tpu.core_type = #tpu.core_type<tc>, window_params = [{transform_indices = @transform_0, window_bounds = array<i64: 8, 8, 16>}, {pipeline_mode = #tpu.pipeline_mode<synchronous>, transform_indices = @transform_1, window_bounds = array<i64: 16, 128>}, {pipeline_mode = #tpu.pipeline_mode<synchronous>, transform_indices = @transform_2, window_bounds = array<i64: 32, 128>}, {pipeline_mode = #tpu.pipeline_mode<synchronous>, transform_indices = @transform_3, window_bounds = array<i64: 1, 128>}, {pipeline_mode = #tpu.pipeline_mode<synchronous>, transform_indices = @transform_4, window_bounds = array<i64: 32, 16>}, {transform_indices = @transform_5, window_bounds = array<i64: 8, 8, 16>}]} {
    %c0 = arith.constant 0 : index
    %c0_0 = arith.constant 0 : index
    %c0_1 = arith.constant 0 : index
    %0 = vector.load %arg1[%c0, %c0_0, %c0_1] : memref<8x8x16xf32, #tpu.memory_space<vmem>>, vector<8x8x16xf32>
    %1 = vector.shape_cast %0 : vector<8x8x16xf32> to vector<64x16xf32>
    %c0_2 = arith.constant 0 : index
    %c0_3 = arith.constant 0 : index
    %2 = vector.load %arg2[%c0_2, %c0_3] : memref<16x128xf32, #tpu.memory_space<vmem>>, vector<16x128xf32>
    %cst = arith.constant dense<0.000000e+00> : vector<64x128xf32>
    %3 = tpu.matmul %1, %2, %cst {dimension_numbers = #tpu.dot_dimension_numbers<[1], [0], [0], [1], [0, 0, 1, 1], [], []>} : vector<64x16xf32>, vector<16x128xf32>, vector<64x128xf32> -> vector<64x128xf32>
    %c0_4 = arith.constant 0 : index
    %c0_5 = arith.constant 0 : index
    %4 = vector.load %arg4[%c0_4, %c0_5] : memref<1x128xf32, #tpu.memory_space<vmem>>, vector<1x128xf32>
    %5 = vector.broadcast %4 : vector<1x128xf32> to vector<64x128xf32>
    %6 = arith.addf %3, %5 : vector<64x128xf32>
    %7 = vector.shape_cast %6 : vector<64x128xf32> to vector<8x8x128xf32>
    %c0_6 = arith.constant 0 : index
    %c0_7 = arith.constant 0 : index
    %8 = vector.load %arg3[%c0_6, %c0_7] : memref<32x128xf32, #tpu.memory_space<vmem>>, vector<32x128xf32>
    %cst_8 = arith.constant 0.000000e+00 : f32
    %9 = vector.broadcast %cst_8 : f32 to vector<8x32xf32>
    %cst_9 = arith.constant 0.000000e+00 : f32
    %10 = vector.broadcast %cst_9 : f32 to vector<8x32xf32>
    %11 = vector.extract_strided_slice %7 {offsets = [0, 0, 0], sizes = [1, 8, 128], strides = [1, 1, 1]} : vector<8x8x128xf32> to vector<1x8x128xf32>
    %12 = vector.shape_cast %11 : vector<1x8x128xf32> to vector<8x128xf32>
    %cst_10 = arith.constant dense<0.000000e+00> : vector<8x128xf32>
    %13 = tpu.matmul %9, %8, %cst_10 {dimension_numbers = #tpu.dot_dimension_numbers<[1], [0], [0], [1], [0, 0, 1, 1], [], []>} : vector<8x32xf32>, vector<32x128xf32>, vector<8x128xf32> -> vector<8x128xf32>
    %14 = arith.addf %12, %13 : vector<8x128xf32>
    %15 = arith.negf %14 : vector<8x128xf32>
    %16 = math.exp %15 : vector<8x128xf32>
    %cst_11 = arith.constant 1.000000e+00 : f32
    %17 = vector.broadcast %cst_11 : f32 to vector<8x128xf32>
    %18 = arith.addf %17, %16 : vector<8x128xf32>
    %19 = arith.divf %17, %18 : vector<8x128xf32>
    %20 = math.tanh %14 : vector<8x128xf32>
    %21 = vector.extract_strided_slice %19 {offsets = [0, 0], sizes = [8, 32], strides = [1, 1]} : vector<8x128xf32> to vector<8x32xf32>
    %22 = vector.extract_strided_slice %19 {offsets = [0, 32], sizes = [8, 32], strides = [1, 1]} : vector<8x128xf32> to vector<8x32xf32>
    %23 = vector.extract_strided_slice %20 {offsets = [0, 64], sizes = [8, 32], strides = [1, 1]} : vector<8x128xf32> to vector<8x32xf32>
    %24 = vector.extract_strided_slice %19 {offsets = [0, 96], sizes = [8, 32], strides = [1, 1]} : vector<8x128xf32> to vector<8x32xf32>
    %25 = arith.mulf %22, %10 : vector<8x32xf32>
    %26 = arith.mulf %21, %23 : vector<8x32xf32>
    %27 = arith.addf %25, %26 : vector<8x32xf32>
    %28 = math.tanh %27 : vector<8x32xf32>
    %29 = arith.mulf %24, %28 : vector<8x32xf32>
    %c0_12 = arith.constant 0 : index
    %c0_13 = arith.constant 0 : index
    %c0_14 = arith.constant 0 : index
    %30 = vector.load %arg7[%c0_12, %c0_13, %c0_14] : memref<8x8x32xf32, #tpu.memory_space<vmem>>, vector<1x8x32xf32>
    %31 = vector.shape_cast %30 : vector<1x8x32xf32> to vector<8x32xf32>
    %32 = vector.shape_cast %29 : vector<8x32xf32> to vector<1x8x32xf32>
    tpu.vector_store %arg7[%c0_12, %c0_13, %c0_14], %32 {strides = array<i32>} : memref<8x8x32xf32, #tpu.memory_space<vmem>>, vector<1x8x32xf32>,
    %33 = vector.extract_strided_slice %7 {offsets = [1, 0, 0], sizes = [1, 8, 128], strides = [1, 1, 1]} : vector<8x8x128xf32> to vector<1x8x128xf32>
    %34 = vector.shape_cast %33 : vector<1x8x128xf32> to vector<8x128xf32>
    %cst_15 = arith.constant dense<0.000000e+00> : vector<8x128xf32>
    %35 = tpu.matmul %29, %8, %cst_15 {dimension_numbers = #tpu.dot_dimension_numbers<[1], [0], [0], [1], [0, 0, 1, 1], [], []>} : vector<8x32xf32>, vector<32x128xf32>, vector<8x128xf32> -> vector<8x128xf32>
    %36 = arith.addf %34, %35 : vector<8x128xf32>
    %37 = arith.negf %36 : vector<8x128xf32>
    %38 = math.exp %37 : vector<8x128xf32>
    %cst_16 = arith.constant 1.000000e+00 : f32
    %39 = vector.broadcast %cst_16 : f32 to vector<8x128xf32>
    %40 = arith.addf %39, %38 : vector<8x128xf32>
    %41 = arith.divf %39, %40 : vector<8x128xf32>
    %42 = math.tanh %36 : vector<8x128xf32>
    %43 = vector.extract_strided_slice %41 {offsets = [0, 0], sizes = [8, 32], strides = [1, 1]} : vector<8x128xf32> to vector<8x32xf32>
    %44 = vector.extract_strided_slice %41 {offsets = [0, 32], sizes = [8, 32], strides = [1, 1]} : vector<8x128xf32> to vector<8x32xf32>
    %45 = vector.extract_strided_slice %42 {offsets = [0, 64], sizes = [8, 32], strides = [1, 1]} : vector<8x128xf32> to vector<8x32xf32>
    %46 = vector.extract_strided_slice %41 {offsets = [0, 96], sizes = [8, 32], strides = [1, 1]} : vector<8x128xf32> to vector<8x32xf32>
    %47 = arith.mulf %44, %27 : vector<8x32xf32>
    %48 = arith.mulf %43, %45 : vector<8x32xf32>
    %49 = arith.addf %47, %48 : vector<8x32xf32>
    %50 = math.tanh %49 : vector<8x32xf32>
    %51 = arith.mulf %46, %50 : vector<8x32xf32>
    %c1 = arith.constant 1 : index
    %c0_17 = arith.constant 0 : index
    %c0_18 = arith.constant 0 : index
    %52 = vector.load %arg7[%c1, %c0_17, %c0_18] : memref<8x8x32xf32, #tpu.memory_space<vmem>>, vector<1x8x32xf32>
    %53 = vector.shape_cast %52 : vector<1x8x32xf32> to vector<8x32xf32>
    %54 = vector.shape_cast %51 : vector<8x32xf32> to vector<1x8x32xf32>
    tpu.vector_store %arg7[%c1, %c0_17, %c0_18], %54 {strides = array<i32>} : memref<8x8x32xf32, #tpu.memory_space<vmem>>, vector<1x8x32xf32>,
    %55 = vector.extract_strided_slice %7 {offsets = [2, 0, 0], sizes = [1, 8, 128], strides = [1, 1, 1]} : vector<8x8x128xf32> to vector<1x8x128xf32>
    %56 = vector.shape_cast %55 : vector<1x8x128xf32> to vector<8x128xf32>
    %cst_19 = arith.constant dense<0.000000e+00> : vector<8x128xf32>
    %57 = tpu.matmul %51, %8, %cst_19 {dimension_numbers = #tpu.dot_dimension_numbers<[1], [0], [0], [1], [0, 0, 1, 1], [], []>} : vector<8x32xf32>, vector<32x128xf32>, vector<8x128xf32> -> vector<8x128xf32>
    %58 = arith.addf %56, %57 : vector<8x128xf32>
    %59 = arith.negf %58 : vector<8x128xf32>
    %60 = math.exp %59 : vector<8x128xf32>
    %cst_20 = arith.constant 1.000000e+00 : f32
    %61 = vector.broadcast %cst_20 : f32 to vector<8x128xf32>
    %62 = arith.addf %61, %60 : vector<8x128xf32>
    %63 = arith.divf %61, %62 : vector<8x128xf32>
    %64 = math.tanh %58 : vector<8x128xf32>
    %65 = vector.extract_strided_slice %63 {offsets = [0, 0], sizes = [8, 32], strides = [1, 1]} : vector<8x128xf32> to vector<8x32xf32>
    %66 = vector.extract_strided_slice %63 {offsets = [0, 32], sizes = [8, 32], strides = [1, 1]} : vector<8x128xf32> to vector<8x32xf32>
    %67 = vector.extract_strided_slice %64 {offsets = [0, 64], sizes = [8, 32], strides = [1, 1]} : vector<8x128xf32> to vector<8x32xf32>
    %68 = vector.extract_strided_slice %63 {offsets = [0, 96], sizes = [8, 32], strides = [1, 1]} : vector<8x128xf32> to vector<8x32xf32>
    %69 = arith.mulf %66, %49 : vector<8x32xf32>
    %70 = arith.mulf %65, %67 : vector<8x32xf32>
    %71 = arith.addf %69, %70 : vector<8x32xf32>
    %72 = math.tanh %71 : vector<8x32xf32>
    %73 = arith.mulf %68, %72 : vector<8x32xf32>
    %c2 = arith.constant 2 : index
    %c0_21 = arith.constant 0 : index
    %c0_22 = arith.constant 0 : index
    %74 = vector.load %arg7[%c2, %c0_21, %c0_22] : memref<8x8x32xf32, #tpu.memory_space<vmem>>, vector<1x8x32xf32>
    %75 = vector.shape_cast %74 : vector<1x8x32xf32> to vector<8x32xf32>
    %76 = vector.shape_cast %73 : vector<8x32xf32> to vector<1x8x32xf32>
    tpu.vector_store %arg7[%c2, %c0_21, %c0_22], %76 {strides = array<i32>} : memref<8x8x32xf32, #tpu.memory_space<vmem>>, vector<1x8x32xf32>,
    %77 = vector.extract_strided_slice %7 {offsets = [3, 0, 0], sizes = [1, 8, 128], strides = [1, 1, 1]} : vector<8x8x128xf32> to vector<1x8x128xf32>
    %78 = vector.shape_cast %77 : vector<1x8x128xf32> to vector<8x128xf32>
    %cst_23 = arith.constant dense<0.000000e+00> : vector<8x128xf32>
    %79 = tpu.matmul %73, %8, %cst_23 {dimension_numbers = #tpu.dot_dimension_numbers<[1], [0], [0], [1], [0, 0, 1, 1], [], []>} : vector<8x32xf32>, vector<32x128xf32>, vector<8x128xf32> -> vector<8x128xf32>
    %80 = arith.addf %78, %79 : vector<8x128xf32>
    %81 = arith.negf %80 : vector<8x128xf32>
    %82 = math.exp %81 : vector<8x128xf32>
    %cst_24 = arith.constant 1.000000e+00 : f32
    %83 = vector.broadcast %cst_24 : f32 to vector<8x128xf32>
    %84 = arith.addf %83, %82 : vector<8x128xf32>
    %85 = arith.divf %83, %84 : vector<8x128xf32>
    %86 = math.tanh %80 : vector<8x128xf32>
    %87 = vector.extract_strided_slice %85 {offsets = [0, 0], sizes = [8, 32], strides = [1, 1]} : vector<8x128xf32> to vector<8x32xf32>
    %88 = vector.extract_strided_slice %85 {offsets = [0, 32], sizes = [8, 32], strides = [1, 1]} : vector<8x128xf32> to vector<8x32xf32>
    %89 = vector.extract_strided_slice %86 {offsets = [0, 64], sizes = [8, 32], strides = [1, 1]} : vector<8x128xf32> to vector<8x32xf32>
    %90 = vector.extract_strided_slice %85 {offsets = [0, 96], sizes = [8, 32], strides = [1, 1]} : vector<8x128xf32> to vector<8x32xf32>
    %91 = arith.mulf %88, %71 : vector<8x32xf32>
    %92 = arith.mulf %87, %89 : vector<8x32xf32>
    %93 = arith.addf %91, %92 : vector<8x32xf32>
    %94 = math.tanh %93 : vector<8x32xf32>
    %95 = arith.mulf %90, %94 : vector<8x32xf32>
    %c3 = arith.constant 3 : index
    %c0_25 = arith.constant 0 : index
    %c0_26 = arith.constant 0 : index
    %96 = vector.load %arg7[%c3, %c0_25, %c0_26] : memref<8x8x32xf32, #tpu.memory_space<vmem>>, vector<1x8x32xf32>
    %97 = vector.shape_cast %96 : vector<1x8x32xf32> to vector<8x32xf32>
    %98 = vector.shape_cast %95 : vector<8x32xf32> to vector<1x8x32xf32>
    tpu.vector_store %arg7[%c3, %c0_25, %c0_26], %98 {strides = array<i32>} : memref<8x8x32xf32, #tpu.memory_space<vmem>>, vector<1x8x32xf32>,
    %99 = vector.extract_strided_slice %7 {offsets = [4, 0, 0], sizes = [1, 8, 128], strides = [1, 1, 1]} : vector<8x8x128xf32> to vector<1x8x128xf32>
    %100 = vector.shape_cast %99 : vector<1x8x128xf32> to vector<8x128xf32>
    %cst_27 = arith.constant dense<0.000000e+00> : vector<8x128xf32>
    %101 = tpu.matmul %95, %8, %cst_27 {dimension_numbers = #tpu.dot_dimension_numbers<[1], [0], [0], [1], [0, 0, 1, 1], [], []>} : vector<8x32xf32>, vector<32x128xf32>, vector<8x128xf32> -> vector<8x128xf32>
    %102 = arith.addf %100, %101 : vector<8x128xf32>
    %103 = arith.negf %102 : vector<8x128xf32>
    %104 = math.exp %103 : vector<8x128xf32>
    %cst_28 = arith.constant 1.000000e+00 : f32
    %105 = vector.broadcast %cst_28 : f32 to vector<8x128xf32>
    %106 = arith.addf %105, %104 : vector<8x128xf32>
    %107 = arith.divf %105, %106 : vector<8x128xf32>
    %108 = math.tanh %102 : vector<8x128xf32>
    %109 = vector.extract_strided_slice %107 {offsets = [0, 0], sizes = [8, 32], strides = [1, 1]} : vector<8x128xf32> to vector<8x32xf32>
    %110 = vector.extract_strided_slice %107 {offsets = [0, 32], sizes = [8, 32], strides = [1, 1]} : vector<8x128xf32> to vector<8x32xf32>
    %111 = vector.extract_strided_slice %108 {offsets = [0, 64], sizes = [8, 32], strides = [1, 1]} : vector<8x128xf32> to vector<8x32xf32>
    %112 = vector.extract_strided_slice %107 {offsets = [0, 96], sizes = [8, 32], strides = [1, 1]} : vector<8x128xf32> to vector<8x32xf32>
    %113 = arith.mulf %110, %93 : vector<8x32xf32>
    %114 = arith.mulf %109, %111 : vector<8x32xf32>
    %115 = arith.addf %113, %114 : vector<8x32xf32>
    %116 = math.tanh %115 : vector<8x32xf32>
    %117 = arith.mulf %112, %116 : vector<8x32xf32>
    %c4 = arith.constant 4 : index
    %c0_29 = arith.constant 0 : index
    %c0_30 = arith.constant 0 : index
    %118 = vector.load %arg7[%c4, %c0_29, %c0_30] : memref<8x8x32xf32, #tpu.memory_space<vmem>>, vector<1x8x32xf32>
    %119 = vector.shape_cast %118 : vector<1x8x32xf32> to vector<8x32xf32>
    %120 = vector.shape_cast %117 : vector<8x32xf32> to vector<1x8x32xf32>
    tpu.vector_store %arg7[%c4, %c0_29, %c0_30], %120 {strides = array<i32>} : memref<8x8x32xf32, #tpu.memory_space<vmem>>, vector<1x8x32xf32>,
    %121 = vector.extract_strided_slice %7 {offsets = [5, 0, 0], sizes = [1, 8, 128], strides = [1, 1, 1]} : vector<8x8x128xf32> to vector<1x8x128xf32>
    %122 = vector.shape_cast %121 : vector<1x8x128xf32> to vector<8x128xf32>
    %cst_31 = arith.constant dense<0.000000e+00> : vector<8x128xf32>
    %123 = tpu.matmul %117, %8, %cst_31 {dimension_numbers = #tpu.dot_dimension_numbers<[1], [0], [0], [1], [0, 0, 1, 1], [], []>} : vector<8x32xf32>, vector<32x128xf32>, vector<8x128xf32> -> vector<8x128xf32>
    %124 = arith.addf %122, %123 : vector<8x128xf32>
    %125 = arith.negf %124 : vector<8x128xf32>
    %126 = math.exp %125 : vector<8x128xf32>
    %cst_32 = arith.constant 1.000000e+00 : f32
    %127 = vector.broadcast %cst_32 : f32 to vector<8x128xf32>
    %128 = arith.addf %127, %126 : vector<8x128xf32>
    %129 = arith.divf %127, %128 : vector<8x128xf32>
    %130 = math.tanh %124 : vector<8x128xf32>
    %131 = vector.extract_strided_slice %129 {offsets = [0, 0], sizes = [8, 32], strides = [1, 1]} : vector<8x128xf32> to vector<8x32xf32>
    %132 = vector.extract_strided_slice %129 {offsets = [0, 32], sizes = [8, 32], strides = [1, 1]} : vector<8x128xf32> to vector<8x32xf32>
    %133 = vector.extract_strided_slice %130 {offsets = [0, 64], sizes = [8, 32], strides = [1, 1]} : vector<8x128xf32> to vector<8x32xf32>
    %134 = vector.extract_strided_slice %129 {offsets = [0, 96], sizes = [8, 32], strides = [1, 1]} : vector<8x128xf32> to vector<8x32xf32>
    %135 = arith.mulf %132, %115 : vector<8x32xf32>
    %136 = arith.mulf %131, %133 : vector<8x32xf32>
    %137 = arith.addf %135, %136 : vector<8x32xf32>
    %138 = math.tanh %137 : vector<8x32xf32>
    %139 = arith.mulf %134, %138 : vector<8x32xf32>
    %c5 = arith.constant 5 : index
    %c0_33 = arith.constant 0 : index
    %c0_34 = arith.constant 0 : index
    %140 = vector.load %arg7[%c5, %c0_33, %c0_34] : memref<8x8x32xf32, #tpu.memory_space<vmem>>, vector<1x8x32xf32>
    %141 = vector.shape_cast %140 : vector<1x8x32xf32> to vector<8x32xf32>
    %142 = vector.shape_cast %139 : vector<8x32xf32> to vector<1x8x32xf32>
    tpu.vector_store %arg7[%c5, %c0_33, %c0_34], %142 {strides = array<i32>} : memref<8x8x32xf32, #tpu.memory_space<vmem>>, vector<1x8x32xf32>,
    %143 = vector.extract_strided_slice %7 {offsets = [6, 0, 0], sizes = [1, 8, 128], strides = [1, 1, 1]} : vector<8x8x128xf32> to vector<1x8x128xf32>
    %144 = vector.shape_cast %143 : vector<1x8x128xf32> to vector<8x128xf32>
    %cst_35 = arith.constant dense<0.000000e+00> : vector<8x128xf32>
    %145 = tpu.matmul %139, %8, %cst_35 {dimension_numbers = #tpu.dot_dimension_numbers<[1], [0], [0], [1], [0, 0, 1, 1], [], []>} : vector<8x32xf32>, vector<32x128xf32>, vector<8x128xf32> -> vector<8x128xf32>
    %146 = arith.addf %144, %145 : vector<8x128xf32>
    %147 = arith.negf %146 : vector<8x128xf32>
    %148 = math.exp %147 : vector<8x128xf32>
    %cst_36 = arith.constant 1.000000e+00 : f32
    %149 = vector.broadcast %cst_36 : f32 to vector<8x128xf32>
    %150 = arith.addf %149, %148 : vector<8x128xf32>
    %151 = arith.divf %149, %150 : vector<8x128xf32>
    %152 = math.tanh %146 : vector<8x128xf32>
    %153 = vector.extract_strided_slice %151 {offsets = [0, 0], sizes = [8, 32], strides = [1, 1]} : vector<8x128xf32> to vector<8x32xf32>
    %154 = vector.extract_strided_slice %151 {offsets = [0, 32], sizes = [8, 32], strides = [1, 1]} : vector<8x128xf32> to vector<8x32xf32>
    %155 = vector.extract_strided_slice %152 {offsets = [0, 64], sizes = [8, 32], strides = [1, 1]} : vector<8x128xf32> to vector<8x32xf32>
    %156 = vector.extract_strided_slice %151 {offsets = [0, 96], sizes = [8, 32], strides = [1, 1]} : vector<8x128xf32> to vector<8x32xf32>
    %157 = arith.mulf %154, %137 : vector<8x32xf32>
    %158 = arith.mulf %153, %155 : vector<8x32xf32>
    %159 = arith.addf %157, %158 : vector<8x32xf32>
    %160 = math.tanh %159 : vector<8x32xf32>
    %161 = arith.mulf %156, %160 : vector<8x32xf32>
    %c6 = arith.constant 6 : index
    %c0_37 = arith.constant 0 : index
    %c0_38 = arith.constant 0 : index
    %162 = vector.load %arg7[%c6, %c0_37, %c0_38] : memref<8x8x32xf32, #tpu.memory_space<vmem>>, vector<1x8x32xf32>
    %163 = vector.shape_cast %162 : vector<1x8x32xf32> to vector<8x32xf32>
    %164 = vector.shape_cast %161 : vector<8x32xf32> to vector<1x8x32xf32>
    tpu.vector_store %arg7[%c6, %c0_37, %c0_38], %164 {strides = array<i32>} : memref<8x8x32xf32, #tpu.memory_space<vmem>>, vector<1x8x32xf32>,
    %165 = vector.extract_strided_slice %7 {offsets = [7, 0, 0], sizes = [1, 8, 128], strides = [1, 1, 1]} : vector<8x8x128xf32> to vector<1x8x128xf32>
    %166 = vector.shape_cast %165 : vector<1x8x128xf32> to vector<8x128xf32>
    %cst_39 = arith.constant dense<0.000000e+00> : vector<8x128xf32>
    %167 = tpu.matmul %161, %8, %cst_39 {dimension_numbers = #tpu.dot_dimension_numbers<[1], [0], [0], [1], [0, 0, 1, 1], [], []>} : vector<8x32xf32>, vector<32x128xf32>, vector<8x128xf32> -> vector<8x128xf32>
    %168 = arith.addf %166, %167 : vector<8x128xf32>
    %169 = arith.negf %168 : vector<8x128xf32>
    %170 = math.exp %169 : vector<8x128xf32>
    %cst_40 = arith.constant 1.000000e+00 : f32
    %171 = vector.broadcast %cst_40 : f32 to vector<8x128xf32>
    %172 = arith.addf %171, %170 : vector<8x128xf32>
    %173 = arith.divf %171, %172 : vector<8x128xf32>
    %174 = math.tanh %168 : vector<8x128xf32>
    %175 = vector.extract_strided_slice %173 {offsets = [0, 0], sizes = [8, 32], strides = [1, 1]} : vector<8x128xf32> to vector<8x32xf32>
    %176 = vector.extract_strided_slice %173 {offsets = [0, 32], sizes = [8, 32], strides = [1, 1]} : vector<8x128xf32> to vector<8x32xf32>
    %177 = vector.extract_strided_slice %174 {offsets = [0, 64], sizes = [8, 32], strides = [1, 1]} : vector<8x128xf32> to vector<8x32xf32>
    %178 = vector.extract_strided_slice %173 {offsets = [0, 96], sizes = [8, 32], strides = [1, 1]} : vector<8x128xf32> to vector<8x32xf32>
    %179 = arith.mulf %176, %159 : vector<8x32xf32>
    %180 = arith.mulf %175, %177 : vector<8x32xf32>
    %181 = arith.addf %179, %180 : vector<8x32xf32>
    %182 = math.tanh %181 : vector<8x32xf32>
    %183 = arith.mulf %178, %182 : vector<8x32xf32>
    %c7 = arith.constant 7 : index
    %c0_41 = arith.constant 0 : index
    %c0_42 = arith.constant 0 : index
    %184 = vector.load %arg7[%c7, %c0_41, %c0_42] : memref<8x8x32xf32, #tpu.memory_space<vmem>>, vector<1x8x32xf32>
    %185 = vector.shape_cast %184 : vector<1x8x32xf32> to vector<8x32xf32>
    %186 = vector.shape_cast %183 : vector<8x32xf32> to vector<1x8x32xf32>
    tpu.vector_store %arg7[%c7, %c0_41, %c0_42], %186 {strides = array<i32>} : memref<8x8x32xf32, #tpu.memory_space<vmem>>, vector<1x8x32xf32>,
    %c0_43 = arith.constant 0 : index
    %c0_44 = arith.constant 0 : index
    %c0_45 = arith.constant 0 : index
    %187 = vector.load %arg7[%c0_43, %c0_44, %c0_45] : memref<8x8x32xf32, #tpu.memory_space<vmem>>, vector<8x8x32xf32>
    %188 = vector.shape_cast %187 : vector<8x8x32xf32> to vector<64x32xf32>
    %c0_46 = arith.constant 0 : index
    %c0_47 = arith.constant 0 : index
    %189 = vector.load %arg5[%c0_46, %c0_47] : memref<32x16xf32, #tpu.memory_space<vmem>>, vector<32x16xf32>
    %cst_48 = arith.constant dense<0.000000e+00> : vector<64x16xf32>
    %190 = tpu.matmul %188, %189, %cst_48 {dimension_numbers = #tpu.dot_dimension_numbers<[1], [0], [0], [1], [0, 0, 1, 1], [], []>} : vector<64x32xf32>, vector<32x16xf32>, vector<64x16xf32> -> vector<64x16xf32>
    %191 = vector.shape_cast %190 : vector<64x16xf32> to vector<8x8x16xf32>
    %c0_49 = arith.constant 0 : index
    %c0_50 = arith.constant 0 : index
    %c0_51 = arith.constant 0 : index
    %192 = vector.load %arg6[%c0_49, %c0_50, %c0_51] : memref<8x8x16xf32, #tpu.memory_space<vmem>>, vector<8x8x16xf32>
    tpu.vector_store %arg6[%c0_49, %c0_50, %c0_51], %191 {strides = array<i32>} : memref<8x8x16xf32, #tpu.memory_space<vmem>>, vector<8x8x16xf32>,
    return
  }
  func.func @transform_0(%arg0: i32) -> (i32, i32, i32) {
    %c0_i32 = arith.constant 0 : i32
    %c0_i32_0 = arith.constant 0 : i32
    %c0_i32_1 = arith.constant 0 : i32
    return %c0_i32, %arg0, %c0_i32_0 : i32, i32, i32
  }
  func.func @transform_1(%arg0: i32) -> (i32, i32) {
    %c0_i32 = arith.constant 0 : i32
    %c0_i32_0 = arith.constant 0 : i32
    %c0_i32_1 = arith.constant 0 : i32
    return %c0_i32, %c0_i32_0 : i32, i32
  }
  func.func @transform_2(%arg0: i32) -> (i32, i32) {
    %c0_i32 = arith.constant 0 : i32
    %c0_i32_0 = arith.constant 0 : i32
    %c0_i32_1 = arith.constant 0 : i32
    return %c0_i32, %c0_i32_0 : i32, i32
  }
  func.func @transform_3(%arg0: i32) -> (i32, i32) {
    %c0_i32 = arith.constant 0 : i32
    %c0_i32_0 = arith.constant 0 : i32
    %c0_i32_1 = arith.constant 0 : i32
    return %c0_i32, %c0_i32_0 : i32, i32
  }
  func.func @transform_4(%arg0: i32) -> (i32, i32) {
    %c0_i32 = arith.constant 0 : i32
    %c0_i32_0 = arith.constant 0 : i32
    %c0_i32_1 = arith.constant 0 : i32
    return %c0_i32, %c0_i32_0 : i32, i32
  }
  func.func @transform_5(%arg0: i32) -> (i32, i32, i32) {
    %c0_i32 = arith.constant 0 : i32
    %c0_i32_0 = arith.constant 0 : i32
    %c0_i32_1 = arith.constant 0 : i32
    return %c0_i32, %arg0, %c0_i32_0 : i32, i32, i32
  }
}

</mosaic_0001>

<llo_original>
// kernel: tpu_custom_call.1
$region0: #{tpu_custom_call.1}
  #allocation0 [shape = 'u32[]', space=smem, size = 0x4, offset = 0x4, fixed_abs, tag = 'smem constant byte address 0x4 - core index']
  #allocation1 [shape = 'u32[144,128]{1,0:T(1,128)}', space=vmem, size = 0x12000, scoped, tag = 'internal scratch']
  #allocation2 [shape = 'f32[8,8,32]{2,1,0:T(8,128)}', space=vmem, size = 0x8000, scoped, tag = 'scratch operand']
  %s0 = inlined_call_operand.hbm [shape: f32[8,8,16], index: 0, kind: input, shape index: {}]
  %s1 = inlined_call_operand.vmem [shape: f32[16,128], index: 1, kind: input, shape index: {}]
  %s2 = inlined_call_operand.vmem [shape: f32[32,128], index: 2, kind: input, shape index: {}]
  %s3 = inlined_call_operand.vmem [shape: f32[1,128], index: 3, kind: input, shape index: {}]
  %s4 = inlined_call_operand.vmem [shape: f32[32,16], index: 4, kind: input, shape index: {}]
  %s5 = inlined_call_operand.hbm [shape: f32[8,8,16], index: 5, kind: output, shape index: {}]
  %s6 = sld [smem:[#allocation0]]
  $region34: #{tpu_custom_call.1} parent=0
    _
  %s8 = ssub.s32 1, %s6
  %s9 = scalar_select 0, %s8, %s6
  $region1: #{tpu_custom_call.1} parent=0
    #allocation3 [shape = 'u8[32768]{0}', space=vmem, size = 0x8000, scoped, tag = 'input window, operand 0, single buffered']
    #allocation4 [shape = 's32[1]{0}', space=sflag, size = 0x4, scoped, tag = 'scoped memory for tpu_custom_call.1']
    #allocation5 [shape = 's32[1]{0}', space=sflag, size = 0x4, scoped, tag = 'scoped memory for tpu_custom_call.1']
    #allocation6 [shape = 'u8[32768]{0}', space=vmem, size = 0x8000, scoped, tag = 'output window, operand 0, single buffered']
    %10 = vsyncpa [#allocation4], 0
    %11 = vsyncpa [#allocation5], 0
    // Predicated region
    $region2: #{tpu_custom_call.1} parent=1 // pred_check
      _
    $region3: #{tpu_custom_call.1} parent=1 // pred_check_branch
      %13 = sbr.rel (0) target = $region5
    $region4: #{tpu_custom_call.1} parent=1 // pred_region
      %s15 = ssub.s32 1024, 1024
      %16 = vsyncadd [#allocation4], %s15
      %s17 = sshll.u32 [#allocation3], 4
      %s18 = int_to_ptr.vmem [resolvable:$true] %s17
      %23 = dma.hbm_to_vmem [thread:$0]  %s0, 1024, %s18, [#allocation4], 128, 128, 8
    $region5: #{tpu_custom_call.1} parent=1 // pred_fallthru
      _
    // Predicated region
    $region6: #{tpu_custom_call.1} parent=1 // pred_check
      _
    $region7: #{tpu_custom_call.1} parent=1 // pred_check_branch
      %25 = sbr.rel (0) target = $region9
    $region8: #{tpu_custom_call.1} parent=1 // pred_region
      _
    $region9: #{tpu_custom_call.1} parent=1 // pred_fallthru
      _
    // Predicated region
    $region10: #{tpu_custom_call.1} parent=1 // pred_check
      _
    $region11: #{tpu_custom_call.1} parent=1 // pred_check_branch
      %27 = sbr.rel (0) target = $region13
    $region12: #{tpu_custom_call.1} parent=1 // pred_region
      _
    $region13: #{tpu_custom_call.1} parent=1 // pred_fallthru
      _
    // Predicated region
    $region14: #{tpu_custom_call.1} parent=1 // pred_check
      _
    $region15: #{tpu_custom_call.1} parent=1 // pred_check_branch
      %29 = sbr.rel (0) target = $region17
    $region16: #{tpu_custom_call.1} parent=1 // pred_region
      _
    $region17: #{tpu_custom_call.1} parent=1 // pred_fallthru
      _
    // Predicated region
    $region18: #{tpu_custom_call.1} parent=1 // pred_check
      _
    $region19: #{tpu_custom_call.1} parent=1 // pred_check_branch
      %31 = sbr.rel (0) target = $region21
    $region20: #{tpu_custom_call.1} parent=1 // pred_region
      _
    $region21: #{tpu_custom_call.1} parent=1 // pred_fallthru
      _
    // Predicated region
    $region22: #{tpu_custom_call.1} parent=1 // pred_check
      _
    $region23: #{tpu_custom_call.1} parent=1 // pred_check_branch
      %33 = sbr.rel (0) target = $region25
    $region24: #{tpu_custom_call.1} parent=1 // pred_region
      %34 = dma.done [#allocation4], 1024
    $region25: #{tpu_custom_call.1} parent=1 // pred_fallthru
      _
    %v35 = vld [vmem:[#allocation3] sm:$0xff]
    %v36 = vld [vmem:[#allocation3 + $0x8] sm:$0xff]
    %v37 = vld [vmem:[#allocation3 + $0x10] sm:$0xff]
    %v38 = vld [vmem:[#allocation3 + $0x18] sm:$0xff]
    %v39 = vld [vmem:[#allocation3 + $0x20] sm:$0xff]
    %v40 = vld [vmem:[#allocation3 + $0x28] sm:$0xff]
    %v41 = vld [vmem:[#allocation3 + $0x30] sm:$0xff]
    %v42 = vld [vmem:[#allocation3 + $0x38] sm:$0xff]
    %v43 = vld [vmem:[%s1] sm:$0xff]
    %v44 = vld [vmem:[%s1 + $0x8] sm:$0xff]
    %v45 = vld [vmem:[%s3] sm:$0x1]
    %v47 = vlaneseq
    %v48 = vshrl.u32 %v47, 7
    %v49 = vsub.s32 0, %v48
    %v50 = vrot.slane %v45, %v49
    %vm52 = vcmask 130048
    %v54 = vsel %vm52, %v35, 0
    %v57 = vsel %vm52, %v36, 0
    %v60 = vsel %vm52, %v37, 0
    %v63 = vsel %vm52, %v38, 0
    %v66 = vsel %vm52, %v39, 0
    %v69 = vsel %vm52, %v40, 0
    %v72 = vsel %vm52, %v41, 0
    %v75 = vsel %vm52, %v42, 0
    %77 = vmatprep.subr.mxu0 0.0
    %78 = vmatpush1.msra.mxu0 0.0
    %79 = vmatprep.subr.mxu0 0.0
    %80 = vmatpush1.msra.mxu0 0.0
    %81 = vmatprep.subr.mxu0 0.0
    %82 = vmatpush1.msra.mxu0 0.0
    %83 = vmatprep.subr.mxu0 0.0
    %84 = vmatpush1.msra.mxu0 0.0
    %85 = vmatprep.subr.mxu0 0.0
    %86 = vmatpush1.msra.mxu0 0.0
    %87 = vmatprep.subr.mxu0 0.0
    %88 = vmatpush1.msra.mxu0 0.0
    %89 = vmatprep.subr.mxu0 0.0
    %90 = vmatpush1.msra.mxu0 0.0
    %91 = vmatprep.subr.mxu0 0.0
    %92 = vmatpush1.msra.mxu0 0.0
    %93 = vmatprep.subr.mxu0 0.0
    %94 = vmatpush1.msra.mxu0 0.0
    %95 = vmatprep.subr.mxu0 0.0
    %96 = vmatpush1.msra.mxu0 0.0
    %97 = vmatprep.subr.mxu0 0.0
    %98 = vmatpush1.msra.mxu0 0.0
    %99 = vmatprep.subr.mxu0 0.0
    %100 = vmatpush1.msra.mxu0 0.0
    %101 = vmatprep.subr.mxu0 0.0
    %102 = vmatpush1.msra.mxu0 0.0
    %103 = vmatprep.subr.mxu0 0.0
    %104 = vmatpush1.msra.mxu0 0.0
    %105 = vmatprep.subr.mxu0 0.0
    %106 = vmatpush1.msra.mxu0 %v44
    %107 = vmatprep.subr.mxu0 0.0
    %108 = vmatpush1.msra.mxu0 %v43
    %109 = vmatprep.subr.mxu0 0.0
    %110 = vmatpush2.msra.mxu0 0.0
    %111 = vmatprep.subr.mxu0 0.0
    %112 = vmatpush2.msra.mxu0 0.0
    %113 = vmatprep.subr.mxu0 0.0
    %114 = vmatpush2.msra.mxu0 0.0
    %115 = vmatprep.subr.mxu0 0.0
    %116 = vmatpush2.msra.mxu0 0.0
    %117 = vmatprep.subr.mxu0 0.0
    %118 = vmatpush2.msra.mxu0 0.0
    %119 = vmatprep.subr.mxu0 0.0
    %120 = vmatpush2.msra.mxu0 0.0
    %121 = vmatprep.subr.mxu0 0.0
    %122 = vmatpush2.msra.mxu0 0.0
    %123 = vmatprep.subr.mxu0 0.0
    %124 = vmatpush2.msra.mxu0 0.0
    %125 = vmatprep.subr.mxu0 0.0
    %126 = vmatpush2.msra.mxu0 0.0
    %127 = vmatprep.subr.mxu0 0.0
    %128 = vmatpush2.msra.mxu0 0.0
    %129 = vmatprep.subr.mxu0 0.0
    %130 = vmatpush2.msra.mxu0 0.0
    %131 = vmatprep.subr.mxu0 0.0
    %132 = vmatpush2.msra.mxu0 0.0
    %133 = vmatprep.subr.mxu0 0.0
    %134 = vmatpush2.msra.mxu0 0.0
    %135 = vmatprep.subr.mxu0 0.0
    %136 = vmatpush2.msra.mxu0 0.0
    %137 = vmatprep.subr.mxu0 0.0
    %138 = vmatpush2.msra.mxu0 0.0
    %139 = vmatprep.subr.mxu0 0.0
    %140 = vmatpush2.msra.mxu0 0.0
    %141 = vmatprep.mubr.f32.mxu0 0.0
    %142 = vmatmul.mubr.f32.gmra.mxu0 %v54
    %v143 = vpop.f32.mrf.mxu0
    %v144 = vadd.f32 %v50, %v143
    %v145 = vpop.f32.mrf.mxu0
    %146 = vmatprep.mubr.f32.mxu0 0.0
    %147 = vmatmul.mubr.f32.gmra.mxu0 %v57
    %v148 = vpop.f32.mrf.mxu0
    %v149 = vadd.f32 %v50, %v148
    %v150 = vpop.f32.mrf.mxu0
    %151 = vmatprep.mubr.f32.mxu0 0.0
    %152 = vmatmul.mubr.f32.gmra.mxu0 %v60
    %v153 = vpop.f32.mrf.mxu0
    %v154 = vadd.f32 %v50, %v153
    %v155 = vpop.f32.mrf.mxu0
    %156 = vmatprep.mubr.f32.mxu0 0.0
    %157 = vmatmul.mubr.f32.gmra.mxu0 %v63
    %v158 = vpop.f32.mrf.mxu0
    %v159 = vadd.f32 %v50, %v158
    %v160 = vpop.f32.mrf.mxu0
    %161 = vmatprep.mubr.f32.mxu0 0.0
    %162 = vmatmul.mubr.f32.gmra.mxu0 %v66
    %v163 = vpop.f32.mrf.mxu0
    %v164 = vadd.f32 %v50, %v163
    %v165 = vpop.f32.mrf.mxu0
    %166 = vmatprep.mubr.f32.mxu0 0.0
    %167 = vmatmul.mubr.f32.gmra.mxu0 %v69
    %v168 = vpop.f32.mrf.mxu0
    %v169 = vadd.f32 %v50, %v168
    %v170 = vpop.f32.mrf.mxu0
    %171 = vmatprep.mubr.f32.mxu0 0.0
    %172 = vmatmul.mubr.f32.gmra.mxu0 %v72
    %v173 = vpop.f32.mrf.mxu0
    %v174 = vadd.f32 %v50, %v173
    %v175 = vpop.f32.mrf.mxu0
    %176 = vmatprep.mubr.f32.mxu0 0.0
    %177 = vmatmul.mubr.f32.gmra.mxu0 %v75
    %v178 = vpop.f32.mrf.mxu0
    %v179 = vadd.f32 %v50, %v178
    %v180 = vpop.f32.mrf.mxu0
    %181 = vdwg.mxu0
    %v182 = vld [vmem:[%s2] sm:$0xff]
    %v183 = vld [vmem:[%s2 + $0x8] sm:$0xff]
    %v184 = vld [vmem:[%s2 + $0x10] sm:$0xff]
    %v185 = vld [vmem:[%s2 + $0x18] sm:$0xff]
    %vm186 = vcmask 261120
    %v188 = vsel %vm186, 0.0, 0
    %190 = vmatprep.subr.mxu0 0.0
    %191 = vmatpush1.msra.mxu0 0.0
    %192 = vmatprep.subr.mxu0 0.0
    %193 = vmatpush1.msra.mxu0 0.0
    %194 = vmatprep.subr.mxu0 0.0
    %195 = vmatpush1.msra.mxu0 0.0
    %196 = vmatprep.subr.mxu0 0.0
    %197 = vmatpush1.msra.mxu0 0.0
    %198 = vmatprep.subr.mxu0 0.0
    %199 = vmatpush1.msra.mxu0 0.0
    %200 = vmatprep.subr.mxu0 0.0
    %201 = vmatpush1.msra.mxu0 0.0
    %202 = vmatprep.subr.mxu0 0.0
    %203 = vmatpush1.msra.mxu0 0.0
    %204 = vmatprep.subr.mxu0 0.0
    %205 = vmatpush1.msra.mxu0 0.0
    %206 = vmatprep.subr.mxu0 0.0
    %207 = vmatpush1.msra.mxu0 0.0
    %208 = vmatprep.subr.mxu0 0.0
    %209 = vmatpush1.msra.mxu0 0.0
    %210 = vmatprep.subr.mxu0 0.0
    %211 = vmatpush1.msra.mxu0 0.0
    %212 = vmatprep.subr.mxu0 0.0
    %213 = vmatpush1.msra.mxu0 0.0
    %214 = vmatprep.subr.mxu0 0.0
    %215 = vmatpush1.msra.mxu0 %v185
    %216 = vmatprep.subr.mxu0 0.0
    %217 = vmatpush1.msra.mxu0 %v184
    %218 = vmatprep.subr.mxu0 0.0
    %219 = vmatpush1.msra.mxu0 %v183
    %220 = vmatprep.subr.mxu0 0.0
    %221 = vmatpush1.msra.mxu0 %v182
    %222 = vmatprep.subr.mxu0 0.0
    %223 = vmatpush2.msra.mxu0 0.0
    %224 = vmatprep.subr.mxu0 0.0
    %225 = vmatpush2.msra.mxu0 0.0
    %226 = vmatprep.subr.mxu0 0.0
    %227 = vmatpush2.msra.mxu0 0.0
    %228 = vmatprep.subr.mxu0 0.0
    %229 = vmatpush2.msra.mxu0 0.0
    %230 = vmatprep.subr.mxu0 0.0
    %231 = vmatpush2.msra.mxu0 0.0
    %232 = vmatprep.subr.mxu0 0.0
    %233 = vmatpush2.msra.mxu0 0.0
    %234 = vmatprep.subr.mxu0 0.0
    %235 = vmatpush2.msra.mxu0 0.0
    %236 = vmatprep.subr.mxu0 0.0
    %237 = vmatpush2.msra.mxu0 0.0
    %238 = vmatprep.subr.mxu0 0.0
    %239 = vmatpush2.msra.mxu0 0.0
    %240 = vmatprep.subr.mxu0 0.0
    %241 = vmatpush2.msra.mxu0 0.0
    %242 = vmatprep.subr.mxu0 0.0
    %243 = vmatpush2.msra.mxu0 0.0
    %244 = vmatprep.subr.mxu0 0.0
    %245 = vmatpush2.msra.mxu0 0.0
    %246 = vmatprep.subr.mxu0 0.0
    %247 = vmatpush2.msra.mxu0 0.0
    %248 = vmatprep.subr.mxu0 0.0
    %249 = vmatpush2.msra.mxu0 0.0
    %250 = vmatprep.subr.mxu0 0.0
    %251 = vmatpush2.msra.mxu0 0.0
    %252 = vmatprep.subr.mxu0 0.0
    %253 = vmatpush2.msra.mxu0 0.0
    %254 = vmatprep.mubr.f32.mxu0 0.0
    %255 = vmatmul.mubr.f32.gmra.mxu0 %v188
    %v256 = vpop.f32.mrf.mxu0
    %v257 = vadd.f32 0.0, %v256
    %v258 = vpop.f32.mrf.mxu0
    %259 = vdwg.mxu0
    %v260 = vadd.f32 %v144, %v257
    %v261 = vxor.u32 %v260, 2147483648
    %v262 = vmul.f32 %v261, 1.442695
    %v263 = vpow.pop %v262
    %v264 = vadd.f32 %v263, 1.0
    %v265 = vrcp.pop %v264
    %v266 = vmul.f32 1.0, %v265
    %v267 = vtanh.pop %v260
    %v268 = vmul.f32 %v266, 0.0
    %270 = vrot.lane.b32.xlu0 %v267, 64
    %v271 = vpop.permute.xlu0 %270
    %v273 = vmul.f32 %v266, %v271
    %275 = vrot.lane.b32.xlu0 %v273, 32
    %v276 = vpop.permute.xlu0 %275
    %v278 = vadd.f32 %v268, %v276
    %v279 = vtanh.pop %v278
    %281 = vrot.lane.b32.xlu0 %v279, 64
    %v282 = vpop.permute.xlu0 %281
    %v284 = vmul.f32 %v266, %v282
    %286 = vrot.lane.b32.xlu0 %v284, 32
    %v287 = vpop.permute.xlu0 %286
    %289 = vst.msk [vmem:[#allocation2] sm:$0xff] %vm186, %v287
    %v290 = vsel %vm186, %v287, 0
    %292 = vmatprep.subr.mxu0 0.0
    %293 = vmatpush1.msra.mxu0 0.0
    %294 = vmatprep.subr.mxu0 0.0
    %295 = vmatpush1.msra.mxu0 0.0
    %296 = vmatprep.subr.mxu0 0.0
    %297 = vmatpush1.msra.mxu0 0.0
    %298 = vmatprep.subr.mxu0 0.0
    %299 = vmatpush1.msra.mxu0 0.0
    %300 = vmatprep.subr.mxu0 0.0
    %301 = vmatpush1.msra.mxu0 0.0
    %302 = vmatprep.subr.mxu0 0.0
    %303 = vmatpush1.msra.mxu0 0.0
    %304 = vmatprep.subr.mxu0 0.0
    %305 = vmatpush1.msra.mxu0 0.0
    %306 = vmatprep.subr.mxu0 0.0
    %307 = vmatpush1.msra.mxu0 0.0
    %308 = vmatprep.subr.mxu0 0.0
    %309 = vmatpush1.msra.mxu0 0.0
    %310 = vmatprep.subr.mxu0 0.0
    %311 = vmatpush1.msra.mxu0 0.0
    %312 = vmatprep.subr.mxu0 0.0
    %313 = vmatpush1.msra.mxu0 0.0
    %314 = vmatprep.subr.mxu0 0.0
    %315 = vmatpush1.msra.mxu0 0.0
    %316 = vmatprep.subr.mxu0 0.0
    %317 = vmatpush1.msra.mxu0 %v185
    %318 = vmatprep.subr.mxu0 0.0
    %319 = vmatpush1.msra.mxu0 %v184
    %320 = vmatprep.subr.mxu0 0.0
    %321 = vmatpush1.msra.mxu0 %v183
    %322 = vmatprep.subr.mxu0 0.0
    %323 = vmatpush1.msra.mxu0 %v182
    %324 = vmatprep.subr.mxu0 0.0
    %325 = vmatpush2.msra.mxu0 0.0
    %326 = vmatprep.subr.mxu0 0.0
    %327 = vmatpush2.msra.mxu0 0.0
    %328 = vmatprep.subr.mxu0 0.0
    %329 = vmatpush2.msra.mxu0 0.0
    %330 = vmatprep.subr.mxu0 0.0
    %331 = vmatpush2.msra.mxu0 0.0
    %332 = vmatprep.subr.mxu0 0.0
    %333 = vmatpush2.msra.mxu0 0.0
    %334 = vmatprep.subr.mxu0 0.0
    %335 = vmatpush2.msra.mxu0 0.0
    %336 = vmatprep.subr.mxu0 0.0
    %337 = vmatpush2.msra.mxu0 0.0
    %338 = vmatprep.subr.mxu0 0.0
    %339 = vmatpush2.msra.mxu0 0.0
    %340 = vmatprep.subr.mxu0 0.0
    %341 = vmatpush2.msra.mxu0 0.0
    %342 = vmatprep.subr.mxu0 0.0
    %343 = vmatpush2.msra.mxu0 0.0
    %344 = vmatprep.subr.mxu0 0.0
    %345 = vmatpush2.msra.mxu0 0.0
    %346 = vmatprep.subr.mxu0 0.0
    %347 = vmatpush2.msra.mxu0 0.0
    %348 = vmatprep.subr.mxu0 0.0
    %349 = vmatpush2.msra.mxu0 0.0
    %350 = vmatprep.subr.mxu0 0.0
    %351 = vmatpush2.msra.mxu0 0.0
    %352 = vmatprep.subr.mxu0 0.0
    %353 = vmatpush2.msra.mxu0 0.0
    %354 = vmatprep.subr.mxu0 0.0
    %355 = vmatpush2.msra.mxu0 0.0
    %356 = vmatprep.mubr.f32.mxu0 0.0
    %357 = vmatmul.mubr.f32.gmra.mxu0 %v290
    %v358 = vpop.f32.mrf.mxu0
    %v359 = vadd.f32 0.0, %v358
    %v360 = vpop.f32.mrf.mxu0
    %361 = vdwg.mxu0
    %v362 = vadd.f32 %v149, %v359
    %v363 = vxor.u32 %v362, 2147483648
    %v364 = vmul.f32 %v363, 1.442695
    %v365 = vpow.pop %v364
    %v366 = vadd.f32 %v365, 1.0
    %v367 = vrcp.pop %v366
    %v368 = vmul.f32 1.0, %v367
    %v369 = vtanh.pop %v362
    %v370 = vmul.f32 %v368, %v278
    %372 = vrot.lane.b32.xlu0 %v369, 64
    %v373 = vpop.permute.xlu0 %372
    %v375 = vmul.f32 %v368, %v373
    %377 = vrot.lane.b32.xlu0 %v375, 32
    %v378 = vpop.permute.xlu0 %377
    %v380 = vadd.f32 %v370, %v378
    %v381 = vtanh.pop %v380
    %383 = vrot.lane.b32.xlu0 %v381, 64
    %v384 = vpop.permute.xlu0 %383
    %v386 = vmul.f32 %v368, %v384
    %388 = vrot.lane.b32.xlu0 %v386, 32
    %v389 = vpop.permute.xlu0 %388
    %s391 = scalar_lea.vmem [#allocation2], 8
    %392 = vst.msk [vmem:[%s391] sm:$0xff] %vm186, %v389
    %v393 = vsel %vm186, %v389, 0
    %395 = vmatprep.subr.mxu0 0.0
    %396 = vmatpush1.msra.mxu0 0.0
    %397 = vmatprep.subr.mxu0 0.0
    %398 = vmatpush1.msra.mxu0 0.0
    %399 = vmatprep.subr.mxu0 0.0
    %400 = vmatpush1.msra.mxu0 0.0
    %401 = vmatprep.subr.mxu0 0.0
    %402 = vmatpush1.msra.mxu0 0.0
    %403 = vmatprep.subr.mxu0 0.0
    %404 = vmatpush1.msra.mxu0 0.0
    %405 = vmatprep.subr.mxu0 0.0
    %406 = vmatpush1.msra.mxu0 0.0
    %407 = vmatprep.subr.mxu0 0.0
    %408 = vmatpush1.msra.mxu0 0.0
    %409 = vmatprep.subr.mxu0 0.0
    %410 = vmatpush1.msra.mxu0 0.0
    %411 = vmatprep.subr.mxu0 0.0
    %412 = vmatpush1.msra.mxu0 0.0
    %413 = vmatprep.subr.mxu0 0.0
    %414 = vmatpush1.msra.mxu0 0.0
    %415 = vmatprep.subr.mxu0 0.0
    %416 = vmatpush1.msra.mxu0 0.0
    %417 = vmatprep.subr.mxu0 0.0
    %418 = vmatpush1.msra.mxu0 0.0
    %419 = vmatprep.subr.mxu0 0.0
    %420 = vmatpush1.msra.mxu0 %v185
    %421 = vmatprep.subr.mxu0 0.0
    %422 = vmatpush1.msra.mxu0 %v184
    %423 = vmatprep.subr.mxu0 0.0
    %424 = vmatpush1.msra.mxu0 %v183
    %425 = vmatprep.subr.mxu0 0.0
    %426 = vmatpush1.msra.mxu0 %v182
    %427 = vmatprep.subr.mxu0 0.0
    %428 = vmatpush2.msra.mxu0 0.0
    %429 = vmatprep.subr.mxu0 0.0
    %430 = vmatpush2.msra.mxu0 0.0
    %431 = vmatprep.subr.mxu0 0.0
    %432 = vmatpush2.msra.mxu0 0.0
    %433 = vmatprep.subr.mxu0 0.0
    %434 = vmatpush2.msra.mxu0 0.0
    %435 = vmatprep.subr.mxu0 0.0
    %436 = vmatpush2.msra.mxu0 0.0
    %437 = vmatprep.subr.mxu0 0.0
    %438 = vmatpush2.msra.mxu0 0.0
    %439 = vmatprep.subr.mxu0 0.0
    %440 = vmatpush2.msra.mxu0 0.0
    %441 = vmatprep.subr.mxu0 0.0
    %442 = vmatpush2.msra.mxu0 0.0
    %443 = vmatprep.subr.mxu0 0.0
    %444 = vmatpush2.msra.mxu0 0.0
    %445 = vmatprep.subr.mxu0 0.0
    %446 = vmatpush2.msra.mxu0 0.0
    %447 = vmatprep.subr.mxu0 0.0
    %448 = vmatpush2.msra.mxu0 0.0
    %449 = vmatprep.subr.mxu0 0.0
    %450 = vmatpush2.msra.mxu0 0.0
    %451 = vmatprep.subr.mxu0 0.0
    %452 = vmatpush2.msra.mxu0 0.0
    %453 = vmatprep.subr.mxu0 0.0
    %454 = vmatpush2.msra.mxu0 0.0
    %455 = vmatprep.subr.mxu0 0.0
    %456 = vmatpush2.msra.mxu0 0.0
    %457 = vmatprep.subr.mxu0 0.0
    %458 = vmatpush2.msra.mxu0 0.0
    %459 = vmatprep.mubr.f32.mxu0 0.0
    %460 = vmatmul.mubr.f32.gmra.mxu0 %v393
    %v461 = vpop.f32.mrf.mxu0
    %v462 = vadd.f32 0.0, %v461
    %v463 = vpop.f32.mrf.mxu0
    %464 = vdwg.mxu0
    %v465 = vadd.f32 %v154, %v462
    %v466 = vxor.u32 %v465, 2147483648
    %v467 = vmul.f32 %v466, 1.442695
    %v468 = vpow.pop %v467
    %v469 = vadd.f32 %v468, 1.0
    %v470 = vrcp.pop %v469
    %v471 = vmul.f32 1.0, %v470
    %v472 = vtanh.pop %v465
    %v473 = vmul.f32 %v471, %v380
    %475 = vrot.lane.b32.xlu0 %v472, 64
    %v476 = vpop.permute.xlu0 %475
    %v478 = vmul.f32 %v471, %v476
    %480 = vrot.lane.b32.xlu0 %v478, 32
    %v481 = vpop.permute.xlu0 %480
    %v483 = vadd.f32 %v473, %v481
    %v484 = vtanh.pop %v483
    %486 = vrot.lane.b32.xlu0 %v484, 64
    %v487 = vpop.permute.xlu0 %486
    %v489 = vmul.f32 %v471, %v487
    %491 = vrot.lane.b32.xlu0 %v489, 32
    %v492 = vpop.permute.xlu0 %491
    %s494 = scalar_lea.vmem [#allocation2], 16
    %495 = vst.msk [vmem:[%s494] sm:$0xff] %vm186, %v492
    %v496 = vsel %vm186, %v492, 0
    %498 = vmatprep.subr.mxu0 0.0
    %499 = vmatpush1.msra.mxu0 0.0
    %500 = vmatprep.subr.mxu0 0.0
    %501 = vmatpush1.msra.mxu0 0.0
    %502 = vmatprep.subr.mxu0 0.0
    %503 = vmatpush1.msra.mxu0 0.0
    %504 = vmatprep.subr.mxu0 0.0
    %505 = vmatpush1.msra.mxu0 0.0
    %506 = vmatprep.subr.mxu0 0.0
    %507 = vmatpush1.msra.mxu0 0.0
    %508 = vmatprep.subr.mxu0 0.0
    %509 = vmatpush1.msra.mxu0 0.0
    %510 = vmatprep.subr.mxu0 0.0
    %511 = vmatpush1.msra.mxu0 0.0
    %512 = vmatprep.subr.mxu0 0.0
    %513 = vmatpush1.msra.mxu0 0.0
    %514 = vmatprep.subr.mxu0 0.0
    %515 = vmatpush1.msra.mxu0 0.0
    %516 = vmatprep.subr.mxu0 0.0
    %517 = vmatpush1.msra.mxu0 0.0
    %518 = vmatprep.subr.mxu0 0.0
    %519 = vmatpush1.msra.mxu0 0.0
    %520 = vmatprep.subr.mxu0 0.0
    %521 = vmatpush1.msra.mxu0 0.0
    %522 = vmatprep.subr.mxu0 0.0
    %523 = vmatpush1.msra.mxu0 %v185
    %524 = vmatprep.subr.mxu0 0.0
    %525 = vmatpush1.msra.mxu0 %v184
    %526 = vmatprep.subr.mxu0 0.0
    %527 = vmatpush1.msra.mxu0 %v183
    %528 = vmatprep.subr.mxu0 0.0
    %529 = vmatpush1.msra.mxu0 %v182
    %530 = vmatprep.subr.mxu0 0.0
    %531 = vmatpush2.msra.mxu0 0.0
    %532 = vmatprep.subr.mxu0 0.0
    %533 = vmatpush2.msra.mxu0 0.0
    %534 = vmatprep.subr.mxu0 0.0
    %535 = vmatpush2.msra.mxu0 0.0
    %536 = vmatprep.subr.mxu0 0.0
    %537 = vmatpush2.msra.mxu0 0.0
    %538 = vmatprep.subr.mxu0 0.0
    %539 = vmatpush2.msra.mxu0 0.0
    %540 = vmatprep.subr.mxu0 0.0
    %541 = vmatpush2.msra.mxu0 0.0
    %542 = vmatprep.subr.mxu0 0.0
    %543 = vmatpush2.msra.mxu0 0.0
    %544 = vmatprep.subr.mxu0 0.0
    %545 = vmatpush2.msra.mxu0 0.0
    %546 = vmatprep.subr.mxu0 0.0
    %547 = vmatpush2.msra.mxu0 0.0
    %548 = vmatprep.subr.mxu0 0.0
    %549 = vmatpush2.msra.mxu0 0.0
    %550 = vmatprep.subr.mxu0 0.0
    %551 = vmatpush2.msra.mxu0 0.0
    %552 = vmatprep.subr.mxu0 0.0
    %553 = vmatpush2.msra.mxu0 0.0
    %554 = vmatprep.subr.mxu0 0.0
    %555 = vmatpush2.msra.mxu0 0.0
    %556 = vmatprep.subr.mxu0 0.0
    %557 = vmatpush2.msra.mxu0 0.0
    %558 = vmatprep.subr.mxu0 0.0
    %559 = vmatpush2.msra.mxu0 0.0
    %560 = vmatprep.subr.mxu0 0.0
    %561 = vmatpush2.msra.mxu0 0.0
    %562 = vmatprep.mubr.f32.mxu0 0.0
    %563 = vmatmul.mubr.f32.gmra.mxu0 %v496
    %v564 = vpop.f32.mrf.mxu0
    %v565 = vadd.f32 0.0, %v564
    %v566 = vpop.f32.mrf.mxu0
    %567 = vdwg.mxu0
    %v568 = vadd.f32 %v159, %v565
    %v569 = vxor.u32 %v568, 2147483648
    %v570 = vmul.f32 %v569, 1.442695
    %v571 = vpow.pop %v570
    %v572 = vadd.f32 %v571, 1.0
    %v573 = vrcp.pop %v572
    %v574 = vmul.f32 1.0, %v573
    %v575 = vtanh.pop %v568
    %v576 = vmul.f32 %v574, %v483
    %578 = vrot.lane.b32.xlu0 %v575, 64
    %v579 = vpop.permute.xlu0 %578
    %v581 = vmul.f32 %v574, %v579
    %583 = vrot.lane.b32.xlu0 %v581, 32
    %v584 = vpop.permute.xlu0 %583
    %v586 = vadd.f32 %v576, %v584
    %v587 = vtanh.pop %v586
    %589 = vrot.lane.b32.xlu0 %v587, 64
    %v590 = vpop.permute.xlu0 %589
    %v592 = vmul.f32 %v574, %v590
    %594 = vrot.lane.b32.xlu0 %v592, 32
    %v595 = vpop.permute.xlu0 %594
    %s597 = scalar_lea.vmem [#allocation2], 24
    %598 = vst.msk [vmem:[%s597] sm:$0xff] %vm186, %v595
    %v599 = vsel %vm186, %v595, 0
    %601 = vmatprep.subr.mxu0 0.0
    %602 = vmatpush1.msra.mxu0 0.0
    %603 = vmatprep.subr.mxu0 0.0
    %604 = vmatpush1.msra.mxu0 0.0
    %605 = vmatprep.subr.mxu0 0.0
    %606 = vmatpush1.msra.mxu0 0.0
    %607 = vmatprep.subr.mxu0 0.0
    %608 = vmatpush1.msra.mxu0 0.0
    %609 = vmatprep.subr.mxu0 0.0
    %610 = vmatpush1.msra.mxu0 0.0
    %611 = vmatprep.subr.mxu0 0.0
    %612 = vmatpush1.msra.mxu0 0.0
    %613 = vmatprep.subr.mxu0 0.0
    %614 = vmatpush1.msra.mxu0 0.0
    %615 = vmatprep.subr.mxu0 0.0
    %616 = vmatpush1.msra.mxu0 0.0
    %617 = vmatprep.subr.mxu0 0.0
    %618 = vmatpush1.msra.mxu0 0.0
    %619 = vmatprep.subr.mxu0 0.0
    %620 = vmatpush1.msra.mxu0 0.0
    %621 = vmatprep.subr.mxu0 0.0
    %622 = vmatpush1.msra.mxu0 0.0
    %623 = vmatprep.subr.mxu0 0.0
    %624 = vmatpush1.msra.mxu0 0.0
    %625 = vmatprep.subr.mxu0 0.0
    %626 = vmatpush1.msra.mxu0 %v185
    %627 = vmatprep.subr.mxu0 0.0
    %628 = vmatpush1.msra.mxu0 %v184
    %629 = vmatprep.subr.mxu0 0.0
    %630 = vmatpush1.msra.mxu0 %v183
    %631 = vmatprep.subr.mxu0 0.0
    %632 = vmatpush1.msra.mxu0 %v182
    %633 = vmatprep.subr.mxu0 0.0
    %634 = vmatpush2.msra.mxu0 0.0
    %635 = vmatprep.subr.mxu0 0.0
    %636 = vmatpush2.msra.mxu0 0.0
    %637 = vmatprep.subr.mxu0 0.0
    %638 = vmatpush2.msra.mxu0 0.0
    %639 = vmatprep.subr.mxu0 0.0
    %640 = vmatpush2.msra.mxu0 0.0
    %641 = vmatprep.subr.mxu0 0.0
    %642 = vmatpush2.msra.mxu0 0.0
    %643 = vmatprep.subr.mxu0 0.0
    %644 = vmatpush2.msra.mxu0 0.0
    %645 = vmatprep.subr.mxu0 0.0
    %646 = vmatpush2.msra.mxu0 0.0
    %647 = vmatprep.subr.mxu0 0.0
    %648 = vmatpush2.msra.mxu0 0.0
    %649 = vmatprep.subr.mxu0 0.0
    %650 = vmatpush2.msra.mxu0 0.0
    %651 = vmatprep.subr.mxu0 0.0
    %652 = vmatpush2.msra.mxu0 0.0
    %653 = vmatprep.subr.mxu0 0.0
    %654 = vmatpush2.msra.mxu0 0.0
    %655 = vmatprep.subr.mxu0 0.0
    %656 = vmatpush2.msra.mxu0 0.0
    %657 = vmatprep.subr.mxu0 0.0
    %658 = vmatpush2.msra.mxu0 0.0
    %659 = vmatprep.subr.mxu0 0.0
    %660 = vmatpush2.msra.mxu0 0.0
    %661 = vmatprep.subr.mxu0 0.0
    %662 = vmatpush2.msra.mxu0 0.0
    %663 = vmatprep.subr.mxu0 0.0
    %664 = vmatpush2.msra.mxu0 0.0
    %665 = vmatprep.mubr.f32.mxu0 0.0
    %666 = vmatmul.mubr.f32.gmra.mxu0 %v599
    %v667 = vpop.f32.mrf.mxu0
    %v668 = vadd.f32 0.0, %v667
    %v669 = vpop.f32.mrf.mxu0
    %670 = vdwg.mxu0
    %v671 = vadd.f32 %v164, %v668
    %v672 = vxor.u32 %v671, 2147483648
    %v673 = vmul.f32 %v672, 1.442695
    %v674 = vpow.pop %v673
    %v675 = vadd.f32 %v674, 1.0
    %v676 = vrcp.pop %v675
    %v677 = vmul.f32 1.0, %v676
    %v678 = vtanh.pop %v671
    %v679 = vmul.f32 %v677, %v586
    %681 = vrot.lane.b32.xlu0 %v678, 64
    %v682 = vpop.permute.xlu0 %681
    %v684 = vmul.f32 %v677, %v682
    %686 = vrot.lane.b32.xlu0 %v684, 32
    %v687 = vpop.permute.xlu0 %686
    %v689 = vadd.f32 %v679, %v687
    %v690 = vtanh.pop %v689
    %692 = vrot.lane.b32.xlu0 %v690, 64
    %v693 = vpop.permute.xlu0 %692
    %v695 = vmul.f32 %v677, %v693
    %697 = vrot.lane.b32.xlu0 %v695, 32
    %v698 = vpop.permute.xlu0 %697
    %s700 = scalar_lea.vmem [#allocation2], 32
    %701 = vst.msk [vmem:[%s700] sm:$0xff] %vm186, %v698
    %v702 = vsel %vm186, %v698, 0
    %704 = vmatprep.subr.mxu0 0.0
    %705 = vmatpush1.msra.mxu0 0.0
    %706 = vmatprep.subr.mxu0 0.0
    %707 = vmatpush1.msra.mxu0 0.0
    %708 = vmatprep.subr.mxu0 0.0
    %709 = vmatpush1.msra.mxu0 0.0
    %710 = vmatprep.subr.mxu0 0.0
    %711 = vmatpush1.msra.mxu0 0.0
    %712 = vmatprep.subr.mxu0 0.0
    %713 = vmatpush1.msra.mxu0 0.0
    %714 = vmatprep.subr.mxu0 0.0
    %715 = vmatpush1.msra.mxu0 0.0
    %716 = vmatprep.subr.mxu0 0.0
    %717 = vmatpush1.msra.mxu0 0.0
    %718 = vmatprep.subr.mxu0 0.0
    %719 = vmatpush1.msra.mxu0 0.0
    %720 = vmatprep.subr.mxu0 0.0
    %721 = vmatpush1.msra.mxu0 0.0
    %722 = vmatprep.subr.mxu0 0.0
    %723 = vmatpush1.msra.mxu0 0.0
    %724 = vmatprep.subr.mxu0 0.0
    %725 = vmatpush1.msra.mxu0 0.0
    %726 = vmatprep.subr.mxu0 0.0
    %727 = vmatpush1.msra.mxu0 0.0
    %728 = vmatprep.subr.mxu0 0.0
    %729 = vmatpush1.msra.mxu0 %v185
    %730 = vmatprep.subr.mxu0 0.0
    %731 = vmatpush1.msra.mxu0 %v184
    %732 = vmatprep.subr.mxu0 0.0
    %733 = vmatpush1.msra.mxu0 %v183
    %734 = vmatprep.subr.mxu0 0.0
    %735 = vmatpush1.msra.mxu0 %v182
    %736 = vmatprep.subr.mxu0 0.0
    %737 = vmatpush2.msra.mxu0 0.0
    %738 = vmatprep.subr.mxu0 0.0
    %739 = vmatpush2.msra.mxu0 0.0
    %740 = vmatprep.subr.mxu0 0.0
    %741 = vmatpush2.msra.mxu0 0.0
    %742 = vmatprep.subr.mxu0 0.0
    %743 = vmatpush2.msra.mxu0 0.0
    %744 = vmatprep.subr.mxu0 0.0
    %745 = vmatpush2.msra.mxu0 0.0
    %746 = vmatprep.subr.mxu0 0.0
    %747 = vmatpush2.msra.mxu0 0.0
    %748 = vmatprep.subr.mxu0 0.0
    %749 = vmatpush2.msra.mxu0 0.0
    %750 = vmatprep.subr.mxu0 0.0
    %751 = vmatpush2.msra.mxu0 0.0
    %752 = vmatprep.subr.mxu0 0.0
    %753 = vmatpush2.msra.mxu0 0.0
    %754 = vmatprep.subr.mxu0 0.0
    %755 = vmatpush2.msra.mxu0 0.0
    %756 = vmatprep.subr.mxu0 0.0
    %757 = vmatpush2.msra.mxu0 0.0
    %758 = vmatprep.subr.mxu0 0.0
    %759 = vmatpush2.msra.mxu0 0.0
    %760 = vmatprep.subr.mxu0 0.0
    %761 = vmatpush2.msra.mxu0 0.0
    %762 = vmatprep.subr.mxu0 0.0
    %763 = vmatpush2.msra.mxu0 0.0
    %764 = vmatprep.subr.mxu0 0.0
    %765 = vmatpush2.msra.mxu0 0.0
    %766 = vmatprep.subr.mxu0 0.0
    %767 = vmatpush2.msra.mxu0 0.0
    %768 = vmatprep.mubr.f32.mxu0 0.0
    %769 = vmatmul.mubr.f32.gmra.mxu0 %v702
    %v770 = vpop.f32.mrf.mxu0
    %v771 = vadd.f32 0.0, %v770
    %v772 = vpop.f32.mrf.mxu0
    %773 = vdwg.mxu0
    %v774 = vadd.f32 %v169, %v771
    %v775 = vxor.u32 %v774, 2147483648
    %v776 = vmul.f32 %v775, 1.442695
    %v777 = vpow.pop %v776
    %v778 = vadd.f32 %v777, 1.0
    %v779 = vrcp.pop %v778
    %v780 = vmul.f32 1.0, %v779
    %v781 = vtanh.pop %v774
    %v782 = vmul.f32 %v780, %v689
    %784 = vrot.lane.b32.xlu0 %v781, 64
    %v785 = vpop.permute.xlu0 %784
    %v787 = vmul.f32 %v780, %v785
    %789 = vrot.lane.b32.xlu0 %v787, 32
    %v790 = vpop.permute.xlu0 %789
    %v792 = vadd.f32 %v782, %v790
    %v793 = vtanh.pop %v792
    %795 = vrot.lane.b32.xlu0 %v793, 64
    %v796 = vpop.permute.xlu0 %795
    %v798 = vmul.f32 %v780, %v796
    %800 = vrot.lane.b32.xlu0 %v798, 32
    %v801 = vpop.permute.xlu0 %800
    %s803 = scalar_lea.vmem [#allocation2], 40
    %804 = vst.msk [vmem:[%s803] sm:$0xff] %vm186, %v801
    %v805 = vsel %vm186, %v801, 0
    %807 = vmatprep.subr.mxu0 0.0
    %808 = vmatpush1.msra.mxu0 0.0
    %809 = vmatprep.subr.mxu0 0.0
    %810 = vmatpush1.msra.mxu0 0.0
    %811 = vmatprep.subr.mxu0 0.0
    %812 = vmatpush1.msra.mxu0 0.0
    %813 = vmatprep.subr.mxu0 0.0
    %814 = vmatpush1.msra.mxu0 0.0
    %815 = vmatprep.subr.mxu0 0.0
    %816 = vmatpush1.msra.mxu0 0.0
    %817 = vmatprep.subr.mxu0 0.0
    %818 = vmatpush1.msra.mxu0 0.0
    %819 = vmatprep.subr.mxu0 0.0
    %820 = vmatpush1.msra.mxu0 0.0
    %821 = vmatprep.subr.mxu0 0.0
    %822 = vmatpush1.msra.mxu0 0.0
    %823 = vmatprep.subr.mxu0 0.0
    %824 = vmatpush1.msra.mxu0 0.0
    %825 = vmatprep.subr.mxu0 0.0
    %826 = vmatpush1.msra.mxu0 0.0
    %827 = vmatprep.subr.mxu0 0.0
    %828 = vmatpush1.msra.mxu0 0.0
    %829 = vmatprep.subr.mxu0 0.0
    %830 = vmatpush1.msra.mxu0 0.0
    %831 = vmatprep.subr.mxu0 0.0
    %832 = vmatpush1.msra.mxu0 %v185
    %833 = vmatprep.subr.mxu0 0.0
    %834 = vmatpush1.msra.mxu0 %v184
    %835 = vmatprep.subr.mxu0 0.0
    %836 = vmatpush1.msra.mxu0 %v183
    %837 = vmatprep.subr.mxu0 0.0
    %838 = vmatpush1.msra.mxu0 %v182
    %839 = vmatprep.subr.mxu0 0.0
    %840 = vmatpush2.msra.mxu0 0.0
    %841 = vmatprep.subr.mxu0 0.0
    %842 = vmatpush2.msra.mxu0 0.0
    %843 = vmatprep.subr.mxu0 0.0
    %844 = vmatpush2.msra.mxu0 0.0
    %845 = vmatprep.subr.mxu0 0.0
    %846 = vmatpush2.msra.mxu0 0.0
    %847 = vmatprep.subr.mxu0 0.0
    %848 = vmatpush2.msra.mxu0 0.0
    %849 = vmatprep.subr.mxu0 0.0
    %850 = vmatpush2.msra.mxu0 0.0
    %851 = vmatprep.subr.mxu0 0.0
    %852 = vmatpush2.msra.mxu0 0.0
    %853 = vmatprep.subr.mxu0 0.0
    %854 = vmatpush2.msra.mxu0 0.0
    %855 = vmatprep.subr.mxu0 0.0
    %856 = vmatpush2.msra.mxu0 0.0
    %857 = vmatprep.subr.mxu0 0.0
    %858 = vmatpush2.msra.mxu0 0.0
    %859 = vmatprep.subr.mxu0 0.0
    %860 = vmatpush2.msra.mxu0 0.0
    %861 = vmatprep.subr.mxu0 0.0
    %862 = vmatpush2.msra.mxu0 0.0
    %863 = vmatprep.subr.mxu0 0.0
    %864 = vmatpush2.msra.mxu0 0.0
    %865 = vmatprep.subr.mxu0 0.0
    %866 = vmatpush2.msra.mxu0 0.0
    %867 = vmatprep.subr.mxu0 0.0
    %868 = vmatpush2.msra.mxu0 0.0
    %869 = vmatprep.subr.mxu0 0.0
    %870 = vmatpush2.msra.mxu0 0.0
    %871 = vmatprep.mubr.f32.mxu0 0.0
    %872 = vmatmul.mubr.f32.gmra.mxu0 %v805
    %v873 = vpop.f32.mrf.mxu0
    %v874 = vadd.f32 0.0, %v873
    %v875 = vpop.f32.mrf.mxu0
    %876 = vdwg.mxu0
    %v877 = vadd.f32 %v174, %v874
    %v878 = vxor.u32 %v877, 2147483648
    %v879 = vmul.f32 %v878, 1.442695
    %v880 = vpow.pop %v879
    %v881 = vadd.f32 %v880, 1.0
    %v882 = vrcp.pop %v881
    %v883 = vmul.f32 1.0, %v882
    %v884 = vtanh.pop %v877
    %v885 = vmul.f32 %v883, %v792
    %887 = vrot.lane.b32.xlu0 %v884, 64
    %v888 = vpop.permute.xlu0 %887
    %v890 = vmul.f32 %v883, %v888
    %892 = vrot.lane.b32.xlu0 %v890, 32
    %v893 = vpop.permute.xlu0 %892
    %v895 = vadd.f32 %v885, %v893
    %v896 = vtanh.pop %v895
    %898 = vrot.lane.b32.xlu0 %v896, 64
    %v899 = vpop.permute.xlu0 %898
    %v901 = vmul.f32 %v883, %v899
    %903 = vrot.lane.b32.xlu0 %v901, 32
    %v904 = vpop.permute.xlu0 %903
    %s906 = scalar_lea.vmem [#allocation2], 48
    %907 = vst.msk [vmem:[%s906] sm:$0xff] %vm186, %v904
    %v908 = vsel %vm186, %v904, 0
    %910 = vmatprep.subr.mxu0 0.0
    %911 = vmatpush1.msra.mxu0 0.0
    %912 = vmatprep.subr.mxu0 0.0
    %913 = vmatpush1.msra.mxu0 0.0
    %914 = vmatprep.subr.mxu0 0.0
    %915 = vmatpush1.msra.mxu0 0.0
    %916 = vmatprep.subr.mxu0 0.0
    %917 = vmatpush1.msra.mxu0 0.0
    %918 = vmatprep.subr.mxu0 0.0
    %919 = vmatpush1.msra.mxu0 0.0
    %920 = vmatprep.subr.mxu0 0.0
    %921 = vmatpush1.msra.mxu0 0.0
    %922 = vmatprep.subr.mxu0 0.0
    %923 = vmatpush1.msra.mxu0 0.0
    %924 = vmatprep.subr.mxu0 0.0
    %925 = vmatpush1.msra.mxu0 0.0
    %926 = vmatprep.subr.mxu0 0.0
    %927 = vmatpush1.msra.mxu0 0.0
    %928 = vmatprep.subr.mxu0 0.0
    %929 = vmatpush1.msra.mxu0 0.0
    %930 = vmatprep.subr.mxu0 0.0
    %931 = vmatpush1.msra.mxu0 0.0
    %932 = vmatprep.subr.mxu0 0.0
    %933 = vmatpush1.msra.mxu0 0.0
    %934 = vmatprep.subr.mxu0 0.0
    %935 = vmatpush1.msra.mxu0 %v185
    %936 = vmatprep.subr.mxu0 0.0
    %937 = vmatpush1.msra.mxu0 %v184
    %938 = vmatprep.subr.mxu0 0.0
    %939 = vmatpush1.msra.mxu0 %v183
    %940 = vmatprep.subr.mxu0 0.0
    %941 = vmatpush1.msra.mxu0 %v182
    %942 = vmatprep.subr.mxu0 0.0
    %943 = vmatpush2.msra.mxu0 0.0
    %944 = vmatprep.subr.mxu0 0.0
    %945 = vmatpush2.msra.mxu0 0.0
    %946 = vmatprep.subr.mxu0 0.0
    %947 = vmatpush2.msra.mxu0 0.0
    %948 = vmatprep.subr.mxu0 0.0
    %949 = vmatpush2.msra.mxu0 0.0
    %950 = vmatprep.subr.mxu0 0.0
    %951 = vmatpush2.msra.mxu0 0.0
    %952 = vmatprep.subr.mxu0 0.0
    %953 = vmatpush2.msra.mxu0 0.0
    %954 = vmatprep.subr.mxu0 0.0
    %955 = vmatpush2.msra.mxu0 0.0
    %956 = vmatprep.subr.mxu0 0.0
    %957 = vmatpush2.msra.mxu0 0.0
    %958 = vmatprep.subr.mxu0 0.0
    %959 = vmatpush2.msra.mxu0 0.0
    %960 = vmatprep.subr.mxu0 0.0
    %961 = vmatpush2.msra.mxu0 0.0
    %962 = vmatprep.subr.mxu0 0.0
    %963 = vmatpush2.msra.mxu0 0.0
    %964 = vmatprep.subr.mxu0 0.0
    %965 = vmatpush2.msra.mxu0 0.0
    %966 = vmatprep.subr.mxu0 0.0
    %967 = vmatpush2.msra.mxu0 0.0
    %968 = vmatprep.subr.mxu0 0.0
    %969 = vmatpush2.msra.mxu0 0.0
    %970 = vmatprep.subr.mxu0 0.0
    %971 = vmatpush2.msra.mxu0 0.0
    %972 = vmatprep.subr.mxu0 0.0
    %973 = vmatpush2.msra.mxu0 0.0
    %974 = vmatprep.mubr.f32.mxu0 0.0
    %975 = vmatmul.mubr.f32.gmra.mxu0 %v908
    %v976 = vpop.f32.mrf.mxu0
    %v977 = vadd.f32 0.0, %v976
    %v978 = vpop.f32.mrf.mxu0
    %979 = vdwg.mxu0
    %v980 = vadd.f32 %v179, %v977
    %v981 = vxor.u32 %v980, 2147483648
    %v982 = vmul.f32 %v981, 1.442695
    %v983 = vpow.pop %v982
    %v984 = vadd.f32 %v983, 1.0
    %v985 = vrcp.pop %v984
    %v986 = vmul.f32 1.0, %v985
    %v987 = vtanh.pop %v980
    %v988 = vmul.f32 %v986, %v895
    %990 = vrot.lane.b32.xlu0 %v987, 64
    %v991 = vpop.permute.xlu0 %990
    %v993 = vmul.f32 %v986, %v991
    %995 = vrot.lane.b32.xlu0 %v993, 32
    %v996 = vpop.permute.xlu0 %995
    %v998 = vadd.f32 %v988, %v996
    %v999 = vtanh.pop %v998
    %1001 = vrot.lane.b32.xlu0 %v999, 64
    %v1002 = vpop.permute.xlu0 %1001
    %v1004 = vmul.f32 %v986, %v1002
    %1006 = vrot.lane.b32.xlu0 %v1004, 32
    %v1007 = vpop.permute.xlu0 %1006
    %s1009 = scalar_lea.vmem [#allocation2], 56
    %1010 = vst.msk [vmem:[%s1009] sm:$0xff] %vm186, %v1007
    %v1011 = vld [vmem:[#allocation2] sm:$0xff]
    %v1012 = vld [vmem:[#allocation2 + $0x8] sm:$0xff]
    %v1013 = vld [vmem:[#allocation2 + $0x10] sm:$0xff]
    %v1014 = vld [vmem:[#allocation2 + $0x18] sm:$0xff]
    %v1015 = vld [vmem:[#allocation2 + $0x20] sm:$0xff]
    %v1016 = vld [vmem:[#allocation2 + $0x28] sm:$0xff]
    %v1017 = vld [vmem:[#allocation2 + $0x30] sm:$0xff]
    %v1018 = vld [vmem:[#allocation2 + $0x38] sm:$0xff]
    %v1019 = vld [vmem:[%s4] sm:$0xff]
    %v1020 = vld [vmem:[%s4 + $0x8] sm:$0xff]
    %v1021 = vld [vmem:[%s4 + $0x10] sm:$0xff]
    %v1022 = vld [vmem:[%s4 + $0x18] sm:$0xff]
    %v1024 = vsel %vm186, %v1011, 0
    %v1027 = vsel %vm186, %v1012, 0
    %v1030 = vsel %vm186, %v1013, 0
    %v1033 = vsel %vm186, %v1014, 0
    %v1036 = vsel %vm186, %v1015, 0
    %v1039 = vsel %vm186, %v1016, 0
    %v1042 = vsel %vm186, %v1017, 0
    %v1045 = vsel %vm186, %v1018, 0
    %1047 = vmatprep.subr.mxu0 0.0
    %1048 = vmatpush1.msra.mxu0 0.0
    %1049 = vmatprep.subr.mxu0 0.0
    %1050 = vmatpush1.msra.mxu0 0.0
    %1051 = vmatprep.subr.mxu0 0.0
    %1052 = vmatpush1.msra.mxu0 0.0
    %1053 = vmatprep.subr.mxu0 0.0
    %1054 = vmatpush1.msra.mxu0 0.0
    %1055 = vmatprep.subr.mxu0 0.0
    %1056 = vmatpush1.msra.mxu0 0.0
    %1057 = vmatprep.subr.mxu0 0.0
    %1058 = vmatpush1.msra.mxu0 0.0
    %1059 = vmatprep.subr.mxu0 0.0
    %1060 = vmatpush1.msra.mxu0 0.0
    %1061 = vmatprep.subr.mxu0 0.0
    %1062 = vmatpush1.msra.mxu0 0.0
    %1063 = vmatprep.subr.mxu0 0.0
    %1064 = vmatpush1.msra.mxu0 0.0
    %1065 = vmatprep.subr.mxu0 0.0
    %1066 = vmatpush1.msra.mxu0 0.0
    %1067 = vmatprep.subr.mxu0 0.0
    %1068 = vmatpush1.msra.mxu0 0.0
    %1069 = vmatprep.subr.mxu0 0.0
    %1070 = vmatpush1.msra.mxu0 0.0
    %1071 = vmatprep.subr.mxu0 0.0
    %1072 = vmatpush1.msra.mxu0 %v1022
    %1073 = vmatprep.subr.mxu0 0.0
    %1074 = vmatpush1.msra.mxu0 %v1021
    %1075 = vmatprep.subr.mxu0 0.0
    %1076 = vmatpush1.msra.mxu0 %v1020
    %1077 = vmatprep.subr.mxu0 0.0
    %1078 = vmatpush1.msra.mxu0 %v1019
    %1079 = vmatprep.subr.mxu0 0.0
    %1080 = vmatpush2.msra.mxu0 0.0
    %1081 = vmatprep.subr.mxu0 0.0
    %1082 = vmatpush2.msra.mxu0 0.0
    %1083 = vmatprep.subr.mxu0 0.0
    %1084 = vmatpush2.msra.mxu0 0.0
    %1085 = vmatprep.subr.mxu0 0.0
    %1086 = vmatpush2.msra.mxu0 0.0
    %1087 = vmatprep.subr.mxu0 0.0
    %1088 = vmatpush2.msra.mxu0 0.0
    %1089 = vmatprep.subr.mxu0 0.0
    %1090 = vmatpush2.msra.mxu0 0.0
    %1091 = vmatprep.subr.mxu0 0.0
    %1092 = vmatpush2.msra.mxu0 0.0
    %1093 = vmatprep.subr.mxu0 0.0
    %1094 = vmatpush2.msra.mxu0 0.0
    %1095 = vmatprep.subr.mxu0 0.0
    %1096 = vmatpush2.msra.mxu0 0.0
    %1097 = vmatprep.subr.mxu0 0.0
    %1098 = vmatpush2.msra.mxu0 0.0
    %1099 = vmatprep.subr.mxu0 0.0
    %1100 = vmatpush2.msra.mxu0 0.0
    %1101 = vmatprep.subr.mxu0 0.0
    %1102 = vmatpush2.msra.mxu0 0.0
    %1103 = vmatprep.subr.mxu0 0.0
    %1104 = vmatpush2.msra.mxu0 0.0
    %1105 = vmatprep.subr.mxu0 0.0
    %1106 = vmatpush2.msra.mxu0 0.0
    %1107 = vmatprep.subr.mxu0 0.0
    %1108 = vmatpush2.msra.mxu0 0.0
    %1109 = vmatprep.subr.mxu0 0.0
    %1110 = vmatpush2.msra.mxu0 0.0
    %1111 = vmatprep.mubr.f32.mxu0 0.0
    %1112 = vmatmul.mubr.f32.gmra.mxu0 %v1024
    %v1113 = vpop.f32.mrf.mxu0
    %v1114 = vadd.f32 0.0, %v1113
    %v1115 = vpop.f32.mrf.mxu0
    %1116 = vmatprep.mubr.f32.mxu0 0.0
    %1117 = vmatmul.mubr.f32.gmra.mxu0 %v1027
    %v1118 = vpop.f32.mrf.mxu0
    %v1119 = vadd.f32 0.0, %v1118
    %v1120 = vpop.f32.mrf.mxu0
    %1121 = vmatprep.mubr.f32.mxu0 0.0
    %1122 = vmatmul.mubr.f32.gmra.mxu0 %v1030
    %v1123 = vpop.f32.mrf.mxu0
    %v1124 = vadd.f32 0.0, %v1123
    %v1125 = vpop.f32.mrf.mxu0
    %1126 = vmatprep.mubr.f32.mxu0 0.0
    %1127 = vmatmul.mubr.f32.gmra.mxu0 %v1033
    %v1128 = vpop.f32.mrf.mxu0
    %v1129 = vadd.f32 0.0, %v1128
    %v1130 = vpop.f32.mrf.mxu0
    %1131 = vmatprep.mubr.f32.mxu0 0.0
    %1132 = vmatmul.mubr.f32.gmra.mxu0 %v1036
    %v1133 = vpop.f32.mrf.mxu0
    %v1134 = vadd.f32 0.0, %v1133
    %v1135 = vpop.f32.mrf.mxu0
    %1136 = vmatprep.mubr.f32.mxu0 0.0
    %1137 = vmatmul.mubr.f32.gmra.mxu0 %v1039
    %v1138 = vpop.f32.mrf.mxu0
    %v1139 = vadd.f32 0.0, %v1138
    %v1140 = vpop.f32.mrf.mxu0
    %1141 = vmatprep.mubr.f32.mxu0 0.0
    %1142 = vmatmul.mubr.f32.gmra.mxu0 %v1042
    %v1143 = vpop.f32.mrf.mxu0
    %v1144 = vadd.f32 0.0, %v1143
    %v1145 = vpop.f32.mrf.mxu0
    %1146 = vmatprep.mubr.f32.mxu0 0.0
    %1147 = vmatmul.mubr.f32.gmra.mxu0 %v1045
    %v1148 = vpop.f32.mrf.mxu0
    %v1149 = vadd.f32 0.0, %v1148
    %v1150 = vpop.f32.mrf.mxu0
    %1151 = vdwg.mxu0
    %1152 = vst.msk [vmem:[#allocation6] sm:$0xff] %vm52, %v1114
    %1153 = vst.msk [vmem:[#allocation6 + $0x8] sm:$0xff] %vm52, %v1119
    %1154 = vst.msk [vmem:[#allocation6 + $0x10] sm:$0xff] %vm52, %v1124
    %1155 = vst.msk [vmem:[#allocation6 + $0x18] sm:$0xff] %vm52, %v1129
    %1156 = vst.msk [vmem:[#allocation6 + $0x20] sm:$0xff] %vm52, %v1134
    %1157 = vst.msk [vmem:[#allocation6 + $0x28] sm:$0xff] %vm52, %v1139
    %1158 = vst.msk [vmem:[#allocation6 + $0x30] sm:$0xff] %vm52, %v1144
    %1159 = vst.msk [vmem:[#allocation6 + $0x38] sm:$0xff] %vm52, %v1149
    // Predicated region
    $region26: #{tpu_custom_call.1} parent=1 // pred_check
      _
    $region27: #{tpu_custom_call.1} parent=1 // pred_check_branch
      %1161 = sbr.rel (0) target = $region29
    $region28: #{tpu_custom_call.1} parent=1 // pred_region
      %s1163 = ssub.s32 1024, 1024
      %1164 = vsyncadd [#allocation5], %s1163
      %s1165 = sshll.u32 [#allocation6], 4
      %s1166 = int_to_ptr.vmem [resolvable:$true] %s1165
      %1171 = dma.vmem_to_hbm [thread:$0]  %s1166, 1024, %s5, [#allocation5], 128, 128, 8
    $region29: #{tpu_custom_call.1} parent=1 // pred_fallthru
      _
    // Predicated region
    $region30: #{tpu_custom_call.1} parent=1 // pred_check
      _
    $region31: #{tpu_custom_call.1} parent=1 // pred_check_branch
      %1173 = sbr.rel (0) target = $region33
    $region32: #{tpu_custom_call.1} parent=1 // pred_region
      %1174 = dma.done [#allocation5], 1024
    $region33: #{tpu_custom_call.1} parent=1 // pred_fallthru
      _
    %1175 = vsyncpa [#allocation4], 1
    %1176 = vsyncpa [#allocation5], 1

</llo_original>
